<compile_context>
chip_gen: v7x
topology: tpu7x:2x2x1
jax: 0.10.0
libtpu: 0.0.40
codegen_flags: <defaults>
</compile_context>

<pallas_src>
import functools

import numpy as np
import jax
import jax.numpy as jnp
from jax import lax
from jax.experimental import pallas as pl
from jax.experimental.pallas import tpu as pltpu

LN_EPS = 1e-5


# ----------------------------------------------------------------------------
# helpers
# ----------------------------------------------------------------------------
def _row_tile(rows, cap=512):
    """Largest row tile <= cap that is a multiple of 8 and divides `rows`."""
    if rows % 8:
        return rows                       # small / odd -> single full block
    t = min(rows, cap)
    t -= t % 8
    while rows % t:
        t -= 8
    return t


def window_partition_j(x, ws):
    B, H, W, C = x.shape
    x = x.reshape(B, H // ws, ws, W // ws, ws, C)
    return x.transpose(0, 1, 3, 2, 4, 5).reshape(-1, ws, ws, C)


def window_reverse_j(windows, ws, H, W):
    B = windows.shape[0] // ((H // ws) * (W // ws))
    x = windows.reshape(B, H // ws, W // ws, ws, ws, -1)
    return x.transpose(0, 1, 3, 2, 4, 5).reshape(B, H, W, -1)


def relative_position_index(ws):
    coords = np.stack(np.meshgrid(np.arange(ws), np.arange(ws), indexing="ij"))
    flat = coords.reshape(2, -1)
    rel = (flat[:, :, None] - flat[:, None, :]).transpose(1, 2, 0).astype(np.int64)
    rel[:, :, 0] += ws - 1
    rel[:, :, 1] += ws - 1
    rel[:, :, 0] *= 2 * ws - 1
    return rel.sum(-1)                    # (N, N)


def build_shift_mask(Hp, Wp, ws, shift):
    img_mask = np.zeros((1, Hp, Wp, 1), np.float32)
    cnt = 0
    for hs in (slice(0, -ws), slice(-ws, -shift), slice(-shift, None)):
        for wsl in (slice(0, -ws), slice(-ws, -shift), slice(-shift, None)):
            img_mask[:, hs, wsl, :] = cnt
            cnt += 1
    mw = img_mask.reshape(1, Hp // ws, ws, Wp // ws, ws, 1)
    mw = mw.transpose(0, 1, 3, 2, 4, 5).reshape(-1, ws * ws)
    mask = mw[:, None, :] - mw[:, :, None]
    return np.where(mask != 0, -100.0, 0.0).astype(np.float32)   # (nW, N, N)


# ----------------------------------------------------------------------------
# K1: row-tiled LayerNorm over the channel dim (exact reference op order when
#     spatial padding is needed).
# ----------------------------------------------------------------------------
def _layernorm_kernel(x_ref, g_ref, b_ref, o_ref):
    x = x_ref[...].astype(jnp.float32)
    mu = jnp.mean(x, axis=-1, keepdims=True)
    var = jnp.mean(jnp.square(x - mu), axis=-1, keepdims=True)
    xn = (x - mu) * lax.rsqrt(var + LN_EPS)
    o_ref[...] = (xn * g_ref[...] + b_ref[...]).astype(o_ref.dtype)


def layernorm_pallas(x2d, gamma, beta):
    R, C = x2d.shape
    tr = _row_tile(R)
    return pl.pallas_call(
        _layernorm_kernel,
        out_shape=jax.ShapeDtypeStruct((R, C), x2d.dtype),
        grid=(R // tr,),
        in_specs=[
            pl.BlockSpec((tr, C), lambda i: (i, 0)),
            pl.BlockSpec((1, C), lambda i: (0, 0)),
            pl.BlockSpec((1, C), lambda i: (0, 0)),
        ],
        out_specs=pl.BlockSpec((tr, C), lambda i: (i, 0)),
        compiler_params=pltpu.CompilerParams(dimension_semantics=("parallel",)),
    )(x2d, gamma.reshape(1, C), beta.reshape(1, C))


# ----------------------------------------------------------------------------
# K2: windowed multi-head attention with relative-position bias (+ shift mask).
#     grid = (num_windows, num_heads); heads accumulate into a f32 VMEM scratch.
# ----------------------------------------------------------------------------
def _window_attention_kernel(x_ref, g1_ref, b1_ref,
                             wq_ref, wk_ref, wv_ref,
                             bq_ref, bk_ref, bv_ref,
                             wp_ref, bp_ref, bias_ref,
                             o_ref, acc_ref, *, sm_scale, apply_ln):
    h = pl.program_id(1)

    @pl.when(h == 0)
    def _():
        acc_ref[...] = jnp.zeros_like(acc_ref)

    x = x_ref[...].astype(jnp.float32)                       # (N, C)
    if apply_ln:                                             # fused LN1
        mu = jnp.mean(x, axis=-1, keepdims=True)
        var = jnp.mean(jnp.square(x - mu), axis=-1, keepdims=True)
        x = (x - mu) * lax.rsqrt(var + LN_EPS)
        x = x * g1_ref[...] + b1_ref[...]

    q = (jnp.dot(x, wq_ref[...], preferred_element_type=jnp.float32)
         + bq_ref[...]) * sm_scale                           # (N, hd)
    k = jnp.dot(x, wk_ref[...], preferred_element_type=jnp.float32) + bk_ref[...]
    v = jnp.dot(x, wv_ref[...], preferred_element_type=jnp.float32) + bv_ref[...]

    s = lax.dot_general(q, k, (((1,), (1,)), ((), ())),
                        preferred_element_type=jnp.float32)  # (N, N) = q @ k^T
    s = s + bias_ref[...]
    s = s - jnp.max(s, axis=-1, keepdims=True)
    p = jnp.exp(s)
    p = p / jnp.sum(p, axis=-1, keepdims=True)

    o = jnp.dot(p, v, preferred_element_type=jnp.float32)    # (N, hd)
    acc_ref[...] += jnp.dot(o, wp_ref[...], preferred_element_type=jnp.float32)

    @pl.when(h == pl.num_programs(1) - 1)
    def _():
        o_ref[...] = (acc_ref[...] + bp_ref[...]).astype(o_ref.dtype)


def window_attention_pallas(x_windows, params, bias_all, num_heads, apply_ln):
    Bw, N, C = x_windows.shape
    hd = C // num_heads
    nWm = bias_all.shape[0]

    # qkv weight (C, 3C): output columns decompose as (3, nH, hd)
    wqkv3 = params["wqkv"].reshape(C, 3, num_heads, hd).transpose(1, 2, 0, 3)
    bqkv3 = params["bqkv"].reshape(3, num_heads, 1, hd)
    wp_h = params["wproj"].reshape(num_heads, hd, C)          # head-major input dim

    kernel = functools.partial(_window_attention_kernel,
                               sm_scale=float(hd) ** -0.5, apply_ln=apply_ln)
    return pl.pallas_call(
        kernel,
        out_shape=jax.ShapeDtypeStruct((Bw, N, C), x_windows.dtype),
        grid=(Bw, num_heads),
        in_specs=[
            pl.BlockSpec((None, N, C), lambda i, h: (i, 0, 0)),     # x window
            pl.BlockSpec((1, C), lambda i, h: (0, 0)),              # LN1 gamma
            pl.BlockSpec((1, C), lambda i, h: (0, 0)),              # LN1 beta
            pl.BlockSpec((None, C, hd), lambda i, h: (h, 0, 0)),    # Wq[h]
            pl.BlockSpec((None, C, hd), lambda i, h: (h, 0, 0)),    # Wk[h]
            pl.BlockSpec((None, C, hd), lambda i, h: (h, 0, 0)),    # Wv[h]
            pl.BlockSpec((None, 1, hd), lambda i, h: (h, 0, 0)),    # bq[h]
            pl.BlockSpec((None, 1, hd), lambda i, h: (h, 0, 0)),    # bk[h]
            pl.BlockSpec((None, 1, hd), lambda i, h: (h, 0, 0)),    # bv[h]
            pl.BlockSpec((None, hd, C), lambda i, h: (h, 0, 0)),    # Wproj[h]
            pl.BlockSpec((1, C), lambda i, h: (0, 0)),              # bproj
            pl.BlockSpec((None, None, N, N),
                         lambda i, h: (i % nWm, h, 0, 0)),          # rel bias + mask
        ],
        out_specs=pl.BlockSpec((None, N, C), lambda i, h: (i, 0, 0)),
        scratch_shapes=[pltpu.VMEM((N, C), jnp.float32)],
        compiler_params=pltpu.CompilerParams(
            dimension_semantics=("parallel", "arbitrary")),
    )(x_windows, params["ln1_g"].reshape(1, C), params["ln1_b"].reshape(1, C),
      wqkv3[0], wqkv3[1], wqkv3[2],
      bqkv3[0], bqkv3[1], bqkv3[2],
      wp_h, params["bproj"].reshape(1, C), bias_all)


# ----------------------------------------------------------------------------
# K3: fused residual1 + DropPath1 + LN2 + MLP + DropPath2 + residual2.
# ----------------------------------------------------------------------------
def _residual_mlp_kernel(short_ref, branch_ref, s1_ref, s2_ref,
                         g2_ref, bt2_ref, w1_ref, b1_ref, w2_ref, b2_ref,
                         o_ref):
    x1 = (short_ref[...].astype(jnp.float32)
          + s1_ref[...] * branch_ref[...].astype(jnp.float32))
    mu = jnp.mean(x1, axis=-1, keepdims=True)
    var = jnp.mean(jnp.square(x1 - mu), axis=-1, keepdims=True)
    xn = (x1 - mu) * lax.rsqrt(var + LN_EPS) * g2_ref[...] + bt2_ref[...]
    hidden = jnp.dot(xn, w1_ref[...], preferred_element_type=jnp.float32) + b1_ref[...]
    # TODO(synk): nn.GELU defaults to the exact erf form; the tanh approximation is
    # used here for portable Mosaic lowering (difference ~1e-3).
    hidden = jax.nn.gelu(hidden, approximate=True)
    y = jnp.dot(hidden, w2_ref[...], preferred_element_type=jnp.float32) + b2_ref[...]
    o_ref[...] = (x1 + s2_ref[...] * y).astype(o_ref.dtype)


def residual_mlp_pallas(shortcut2d, branch2d, scale1_rows, scale2_rows, params):
    R, C = shortcut2d.shape
    Ch = params["w1"].shape[1]
    tr = _row_tile(R)
    return pl.pallas_call(
        _residual_mlp_kernel,
        out_shape=jax.ShapeDtypeStruct((R, C), shortcut2d.dtype),
        grid=(R // tr,),
        in_specs=[
            pl.BlockSpec((tr, C), lambda i: (i, 0)),   # shortcut
            pl.BlockSpec((tr, C), lambda i: (i, 0)),   # attention branch
            pl.BlockSpec((tr, 1), lambda i: (i, 0)),   # DropPath scale #1
            pl.BlockSpec((tr, 1), lambda i: (i, 0)),   # DropPath scale #2
            pl.BlockSpec((1, C), lambda i: (0, 0)),    # LN2 gamma
            pl.BlockSpec((1, C), lambda i: (0, 0)),    # LN2 beta
            pl.BlockSpec((C, Ch), lambda i: (0, 0)),   # MLP fc1 weight
            pl.BlockSpec((1, Ch), lambda i: (0, 0)),   # MLP fc1 bias
            pl.BlockSpec((Ch, C), lambda i: (0, 0)),   # MLP fc2 weight
            pl.BlockSpec((1, C), lambda i: (0, 0)),    # MLP fc2 bias
        ],
        out_specs=pl.BlockSpec((tr, C), lambda i: (i, 0)),
        compiler_params=pltpu.CompilerParams(dimension_semantics=("parallel",)),
    )(shortcut2d, branch2d, scale1_rows, scale2_rows,
      params["ln2_g"].reshape(1, C), params["ln2_b"].reshape(1, C),
      params["w1"], params["b1"].reshape(1, Ch),
      params["w2"], params["b2"].reshape(1, C))


# ----------------------------------------------------------------------------
# full block forward (Pallas) and module-style wrapper
# ----------------------------------------------------------------------------
def swin_block_forward_pallas(params, x, H, W, *, num_heads, window_size,
                              shift_size, scale1_b, scale2_b):
    B, L, C = x.shape
    assert L == H * W, "input feature has wrong size"
    ws, shift = window_size, shift_size
    N = ws * ws

    pad_r = (ws - W % ws) % ws
    pad_b = (ws - H % ws) % ws
    Hp, Wp = H + pad_b, W + pad_r
    need_pad = (pad_r > 0) or (pad_b > 0)

    shortcut = x

    if need_pad:
        # reference op order: LN1 before zero padding -> standalone LN kernel
        xn = layernorm_pallas(x.reshape(B * L, C), params["ln1_g"], params["ln1_b"])
        xv = jnp.pad(xn.reshape(B, H, W, C),
                     ((0, 0), (0, pad_b), (0, pad_r), (0, 0)))
        apply_ln_in_attn = False
    else:
        xv = x.reshape(B, H, W, C)        # LN1 fused into the attention kernel
        apply_ln_in_attn = True

    if shift > 0:
        xv = jnp.roll(xv, (-shift, -shift), axis=(1, 2))

    x_windows = window_partition_j(xv, ws).reshape(-1, N, C)

    rel_idx = relative_position_index(ws)
    rel_bias = params["rel_table"][rel_idx.reshape(-1)].reshape(N, N, num_heads)
    rel_bias = jnp.transpose(rel_bias, (2, 0, 1))             # (nH, N, N)
    if shift > 0:
        mask = jnp.asarray(build_shift_mask(Hp, Wp, ws, shift))  # (nW, N, N)
        bias_all = rel_bias[None, :, :, :] + mask[:, None, :, :]
    else:
        bias_all = rel_bias[None, :, :, :]
    bias_all = bias_all.astype(jnp.float32)

    attn_windows = window_attention_pallas(x_windows, params, bias_all,
                                           num_heads, apply_ln_in_attn)

    xv = window_reverse_j(attn_windows.reshape(-1, ws, ws, C), ws, Hp, Wp)
    if shift > 0:
        xv = jnp.roll(xv, (shift, shift), axis=(1, 2))
    if need_pad:
        xv = xv[:, :H, :W, :]
    attn_branch = xv.reshape(B * L, C)

    scale1_rows = jnp.repeat(scale1_b.astype(jnp.float32), L).reshape(B * L, 1)
    scale2_rows = jnp.repeat(scale2_b.astype(jnp.float32), L).reshape(B * L, 1)
    out = residual_mlp_pallas(shortcut.reshape(B * L, C), attn_branch,
                              scale1_rows, scale2_rows, params)
    return out.reshape(B, L, C)


def init_swin_block_params(key, dim, num_heads, window_size, mlp_ratio):
    Ch = int(dim * mlp_ratio)
    ks = jax.random.split(key, 10)
    n = lambda k, s, scale=0.02: scale * jax.random.normal(k, s, jnp.float32)
    return {
        "ln1_g": 1.0 + n(ks[0], (dim,), 0.1), "ln1_b": n(ks[1], (dim,), 0.1),
        "wqkv": n(ks[2], (dim, 3 * dim)), "bqkv": n(ks[3], (3 * dim,)),
        "wproj": n(ks[4], (dim, dim)), "bproj": n(ks[5], (dim,)),
        "rel_table": n(ks[6], ((2 * window_size - 1) ** 2, num_heads)),
        "ln2_g": 1.0 + n(ks[7], (dim,), 0.1), "ln2_b": n(ks[8], (dim,), 0.1),
        "w1": n(ks[9], (dim, Ch)), "b1": jnp.zeros((Ch,), jnp.float32),
        "w2": n(jax.random.fold_in(key, 99), (Ch, dim)),
        "b2": jnp.zeros((dim,), jnp.float32),
    }


class SwinTransformerBlockPallas:
    """Pallas-TPU forward pass of SwinTransformerBlock."""
    # TODO(synk): nn.Dropout paths (drop / attn_drop > 0) not implemented; the
    # module defaults (0.0) make them identities.

    def __init__(self, dim, num_heads, window_size=7, shift_size=0,
                 mlp_ratio=4.0, drop_path=0.0, *, key):
        assert 0 <= shift_size < window_size
        self.dim, self.num_heads = dim, num_heads
        self.window_size, self.shift_size = window_size, shift_size
        self.drop_path_prob = float(drop_path)
        self.training = True
        self.params = init_swin_block_params(key, dim, num_heads, window_size, mlp_ratio)

    def drop_path_scales(self, rng, batch):
        """Hoisted DropPath RNG -> per-sample scale vectors (one per DropPath call)."""
        if (not self.training) or self.drop_path_prob == 0.0:
            ones = jnp.ones((batch,), jnp.float32)
            return ones, ones
        keep = 1.0 - self.drop_path_prob
        k1, k2 = jax.random.split(rng)
        s1 = jax.random.bernoulli(k1, keep, (batch,)).astype(jnp.float32) / keep
        s2 = jax.random.bernoulli(k2, keep, (batch,)).astype(jnp.float32) / keep
        return s1, s2

    def __call__(self, x, H, W, scale1_b, scale2_b):
        return swin_block_forward_pallas(
            self.params, x, H, W, num_heads=self.num_heads,
            window_size=self.window_size, shift_size=self.shift_size,
            scale1_b=scale1_b, scale2_b=scale2_b)


# ----------------------------------------------------------------------------
# pure-JAX reference (mirrors the PyTorch forward) for self-checking
# ----------------------------------------------------------------------------
def swin_block_reference(params, x, H, W, *, num_heads, window_size,
                         shift_size, scale1_b, scale2_b):
    B, L, C = x.shape
    ws, shift, nH = window_size, shift_size, num_heads
    N, hd = ws * ws, C // num_heads

    def ln(v, g, b):
        mu = jnp.mean(v, axis=-1, keepdims=True)
        var = jnp.mean(jnp.square(v - mu), axis=-1, keepdims=True)
        return (v - mu) * lax.rsqrt(var + LN_EPS) * g + b

    shortcut = x
    xv = ln(x, params["ln1_g"], params["ln1_b"]).reshape(B, H, W, C)
    pad_r = (ws - W % ws) % ws
    pad_b = (ws - H % ws) % ws
    xv = jnp.pad(xv, ((0, 0), (0, pad_b), (0, pad_r), (0, 0)))
    Hp, Wp = H + pad_b, W + pad_r
    if shift > 0:
        xv = jnp.roll(xv, (-shift, -shift), axis=(1, 2))
    xw = window_partition_j(xv, ws).reshape(-1, N, C)
    Bw = xw.shape[0]

    qkv = (xw @ params["wqkv"] + params["bqkv"]).reshape(Bw, N, 3, nH, hd)
    qkv = jnp.transpose(qkv, (2, 0, 3, 1, 4))
    q, k, v = qkv[0] * (hd ** -0.5), qkv[1], qkv[2]
    attn = jnp.einsum("bhnd,bhmd->bhnm", q, k)

    rel_idx = relative_position_index(ws)
    rel_bias = params["rel_table"][rel_idx.reshape(-1)].reshape(N, N, nH)
    attn = attn + jnp.transpose(rel_bias, (2, 0, 1))[None]
    if shift > 0:
        mask = jnp.asarray(build_shift_mask(Hp, Wp, ws, shift))
        nW = mask.shape[0]
        attn = attn.reshape(Bw // nW, nW, nH, N, N) + mask[None, :, None]
        attn = attn.reshape(Bw, nH, N, N)
    attn = jax.nn.softmax(attn, axis=-1)
    out = jnp.einsum("bhnm,bhmd->bhnd", attn, v)
    out = jnp.transpose(out, (0, 2, 1, 3)).reshape(Bw, N, C)
    out = out @ params["wproj"] + params["bproj"]

    xv = window_reverse_j(out.reshape(-1, ws, ws, C), ws, Hp, Wp)
    if shift > 0:
        xv = jnp.roll(xv, (shift, shift), axis=(1, 2))
    xv = xv[:, :H, :W, :].reshape(B, L, C)

    x1 = shortcut + scale1_b[:, None, None] * xv
    hid = jax.nn.gelu(ln(x1, params["ln2_g"], params["ln2_b"]) @ params["w1"]
                      + params["b1"], approximate=True)
    y = hid @ params["w2"] + params["b2"]
    return x1 + scale2_b[:, None, None] * y


# ----------------------------------------------------------------------------
if __name__ == "__main__":
    key = jax.random.PRNGKey(0)
    kx, kp, kd = jax.random.split(key, 3)

    # Config 1: shifted windows (SW-MSA, mask path), no padding, fused LN1,
    #           training-mode DropPath (hoisted Bernoulli -> per-sample scales).
    B, H, W, C = 2, 8, 8, 32
    num_heads, window_size, shift_size = 4, 4, 2
    L = H * W

    block = SwinTransformerBlockPallas(dim=C, num_heads=num_heads,
                                       window_size=window_size,
                                       shift_size=shift_size, mlp_ratio=4.0,
                                       drop_path=0.25, key=kp)
    x = jax.random.normal(kx, (B, L, C), jnp.float32)
    s1, s2 = block.drop_path_scales(kd, B)

    out = jax.block_until_ready(block(x, H, W, s1, s2))
    ref = jax.block_until_ready(swin_block_reference(
        block.params, x, H, W, num_heads=num_heads, window_size=window_size,
        shift_size=shift_size, scale1_b=s1, scale2_b=s2))
    assert out.shape == (B, L, C) and out.dtype == x.dtype
    assert jnp.allclose(out, ref, atol=2e-2, rtol=2e-2), \
        float(jnp.max(jnp.abs(out - ref)))

    # Config 2: non-shifted (W-MSA), spatial size not divisible by the window
    #           -> zero-padding path with standalone LN1 kernel; eval DropPath.
    H2 = W2 = 6
    L2 = H2 * W2
    block2 = SwinTransformerBlockPallas(dim=C, num_heads=num_heads,
                                        window_size=window_size, shift_size=0,
                                        mlp_ratio=4.0, drop_path=0.25, key=kp)
    block2.training = False
    x2 = jax.random.normal(jax.random.PRNGKey(3), (B, L2, C), jnp.float32)
    s1e, s2e = block2.drop_path_scales(kd, B)

    out2 = jax.block_until_ready(block2(x2, H2, W2, s1e, s2e))
    ref2 = jax.block_until_ready(swin_block_reference(
        block2.params, x2, H2, W2, num_heads=num_heads, window_size=window_size,
        shift_size=0, scale1_b=s1e, scale2_b=s2e))
    assert jnp.allclose(out2, ref2, atol=2e-2, rtol=2e-2), \
        float(jnp.max(jnp.abs(out2 - ref2)))

    print("KERNEL_OK")
</pallas_src>

<mosaic_0001>
module attributes {stable_mosaic.version = 11 : i64} {
  func.func @_window_attention_kernel(%arg0: i32, %arg1: i32, %arg2: memref<1x16x32xf32, #tpu.memory_space<vmem>>, %arg3: memref<1x32xf32, #tpu.memory_space<vmem>>, %arg4: memref<1x32xf32, #tpu.memory_space<vmem>>, %arg5: memref<1x32x8xf32, #tpu.memory_space<vmem>>, %arg6: memref<1x32x8xf32, #tpu.memory_space<vmem>>, %arg7: memref<1x32x8xf32, #tpu.memory_space<vmem>>, %arg8: memref<1x1x8xf32, #tpu.memory_space<vmem>>, %arg9: memref<1x1x8xf32, #tpu.memory_space<vmem>>, %arg10: memref<1x1x8xf32, #tpu.memory_space<vmem>>, %arg11: memref<1x8x32xf32, #tpu.memory_space<vmem>>, %arg12: memref<1x32xf32, #tpu.memory_space<vmem>>, %arg13: memref<1x1x16x16xf32, #tpu.memory_space<vmem>>, %arg14: memref<1x16x32xf32, #tpu.memory_space<vmem>>, %arg15: memref<16x32xf32, #tpu.memory_space<vmem>>) attributes {dimension_semantics = [#tpu.dimension_semantics<parallel>, #tpu.dimension_semantics<arbitrary>], iteration_bounds = array<i64: 8, 4>, scalar_prefetch = 0 : i64, scratch_operands = 1 : i64, tpu.core_type = #tpu.core_type<tc>, window_params = [{transform_indices = @transform_0, window_bounds = array<i64: 1, 16, 32>}, {pipeline_mode = #tpu.pipeline_mode<synchronous>, transform_indices = @transform_1, window_bounds = array<i64: 1, 32>}, {pipeline_mode = #tpu.pipeline_mode<synchronous>, transform_indices = @transform_2, window_bounds = array<i64: 1, 32>}, {transform_indices = @transform_3, window_bounds = array<i64: 1, 32, 8>}, {transform_indices = @transform_4, window_bounds = array<i64: 1, 32, 8>}, {transform_indices = @transform_5, window_bounds = array<i64: 1, 32, 8>}, {transform_indices = @transform_6, window_bounds = array<i64: 1, 1, 8>}, {transform_indices = @transform_7, window_bounds = array<i64: 1, 1, 8>}, {transform_indices = @transform_8, window_bounds = array<i64: 1, 1, 8>}, {transform_indices = @transform_9, window_bounds = array<i64: 1, 8, 32>}, {pipeline_mode = #tpu.pipeline_mode<synchronous>, transform_indices = @transform_10, window_bounds = array<i64: 1, 32>}, {transform_indices = @transform_11, window_bounds = array<i64: 1, 1, 16, 16>}, {transform_indices = @transform_12, window_bounds = array<i64: 1, 16, 32>}]} {
    %c0_i32 = arith.constant 0 : i32
    %0 = arith.cmpi eq, %arg1, %c0_i32 : i32
    %1 = arith.extui %0 : i1 to i32
    %c0_i32_0 = arith.constant 0 : i32
    %2 = arith.cmpi ne, %1, %c0_i32_0 : i32
    scf.if %2 {
      %cst_50 = arith.constant 0.000000e+00 : f32
      %75 = vector.broadcast %cst_50 : f32 to vector<16x32xf32>
      %c0_51 = arith.constant 0 : index
      %c0_52 = arith.constant 0 : index
      %76 = vector.load %arg15[%c0_51, %c0_52] : memref<16x32xf32, #tpu.memory_space<vmem>>, vector<16x32xf32>
      tpu.vector_store %arg15[%c0_51, %c0_52], %75 {strides = array<i32>} : memref<16x32xf32, #tpu.memory_space<vmem>>, vector<16x32xf32>,
    } else {
    }
    %c0 = arith.constant 0 : index
    %c0_1 = arith.constant 0 : index
    %c0_2 = arith.constant 0 : index
    %3 = vector.load %arg2[%c0, %c0_1, %c0_2] : memref<1x16x32xf32, #tpu.memory_space<vmem>>, vector<1x16x32xf32>
    %4 = vector.shape_cast %3 : vector<1x16x32xf32> to vector<16x32xf32>
    %cst = arith.constant dense<0.000000e+00> : vector<16xf32>
    %5 = vector.multi_reduction <add>, %4, %cst [1] : vector<16x32xf32> to vector<16xf32>
    %6 = vector.shape_cast %5 : vector<16xf32> to vector<16x1xf32>
    %cst_3 = arith.constant 3.200000e+01 : f32
    %7 = vector.broadcast %cst_3 : f32 to vector<16x1xf32>
    %8 = arith.divf %6, %7 : vector<16x1xf32>
    %9 = vector.broadcast %8 : vector<16x1xf32> to vector<16x32xf32>
    %10 = arith.subf %4, %9 : vector<16x32xf32>
    %11 = arith.mulf %10, %10 : vector<16x32xf32>
    %cst_4 = arith.constant dense<0.000000e+00> : vector<16xf32>
    %12 = vector.multi_reduction <add>, %11, %cst_4 [1] : vector<16x32xf32> to vector<16xf32>
    %13 = vector.shape_cast %12 : vector<16xf32> to vector<16x1xf32>
    %cst_5 = arith.constant 3.200000e+01 : f32
    %14 = vector.broadcast %cst_5 : f32 to vector<16x1xf32>
    %15 = arith.divf %13, %14 : vector<16x1xf32>
    %16 = vector.broadcast %8 : vector<16x1xf32> to vector<16x32xf32>
    %17 = arith.subf %4, %16 : vector<16x32xf32>
    %cst_6 = arith.constant 9.99999974E-6 : f32
    %18 = vector.broadcast %cst_6 : f32 to vector<16x1xf32>
    %19 = arith.addf %15, %18 : vector<16x1xf32>
    %20 = math.rsqrt %19 : vector<16x1xf32>
    %21 = vector.broadcast %20 : vector<16x1xf32> to vector<16x32xf32>
    %22 = arith.mulf %17, %21 : vector<16x32xf32>
    %c0_7 = arith.constant 0 : index
    %c0_8 = arith.constant 0 : index
    %23 = vector.load %arg3[%c0_7, %c0_8] : memref<1x32xf32, #tpu.memory_space<vmem>>, vector<1x32xf32>
    %24 = vector.broadcast %23 : vector<1x32xf32> to vector<16x32xf32>
    %25 = arith.mulf %22, %24 : vector<16x32xf32>
    %c0_9 = arith.constant 0 : index
    %c0_10 = arith.constant 0 : index
    %26 = vector.load %arg4[%c0_9, %c0_10] : memref<1x32xf32, #tpu.memory_space<vmem>>, vector<1x32xf32>
    %27 = vector.broadcast %26 : vector<1x32xf32> to vector<16x32xf32>
    %28 = arith.addf %25, %27 : vector<16x32xf32>
    %c0_11 = arith.constant 0 : index
    %c0_12 = arith.constant 0 : index
    %c0_13 = arith.constant 0 : index
    %29 = vector.load %arg5[%c0_11, %c0_12, %c0_13] : memref<1x32x8xf32, #tpu.memory_space<vmem>>, vector<1x32x8xf32>
    %30 = vector.shape_cast %29 : vector<1x32x8xf32> to vector<32x8xf32>
    %cst_14 = arith.constant dense<0.000000e+00> : vector<16x8xf32>
    %31 = tpu.matmul %28, %30, %cst_14 {dimension_numbers = #tpu.dot_dimension_numbers<[1], [0], [0], [1], [0, 0, 1, 1], [], []>} : vector<16x32xf32>, vector<32x8xf32>, vector<16x8xf32> -> vector<16x8xf32>
    %c0_15 = arith.constant 0 : index
    %c0_16 = arith.constant 0 : index
    %c0_17 = arith.constant 0 : index
    %32 = vector.load %arg8[%c0_15, %c0_16, %c0_17] : memref<1x1x8xf32, #tpu.memory_space<vmem>>, vector<1x1x8xf32>
    %33 = vector.shape_cast %32 : vector<1x1x8xf32> to vector<1x8xf32>
    %34 = vector.broadcast %33 : vector<1x8xf32> to vector<16x8xf32>
    %35 = arith.addf %31, %34 : vector<16x8xf32>
    %cst_18 = arith.constant 0.353553385 : f32
    %36 = vector.broadcast %cst_18 : f32 to vector<16x8xf32>
    %37 = arith.mulf %35, %36 : vector<16x8xf32>
    %c0_19 = arith.constant 0 : index
    %c0_20 = arith.constant 0 : index
    %c0_21 = arith.constant 0 : index
    %38 = vector.load %arg6[%c0_19, %c0_20, %c0_21] : memref<1x32x8xf32, #tpu.memory_space<vmem>>, vector<1x32x8xf32>
    %39 = vector.shape_cast %38 : vector<1x32x8xf32> to vector<32x8xf32>
    %cst_22 = arith.constant dense<0.000000e+00> : vector<16x8xf32>
    %40 = tpu.matmul %28, %39, %cst_22 {dimension_numbers = #tpu.dot_dimension_numbers<[1], [0], [0], [1], [0, 0, 1, 1], [], []>} : vector<16x32xf32>, vector<32x8xf32>, vector<16x8xf32> -> vector<16x8xf32>
    %c0_23 = arith.constant 0 : index
    %c0_24 = arith.constant 0 : index
    %c0_25 = arith.constant 0 : index
    %41 = vector.load %arg9[%c0_23, %c0_24, %c0_25] : memref<1x1x8xf32, #tpu.memory_space<vmem>>, vector<1x1x8xf32>
    %42 = vector.shape_cast %41 : vector<1x1x8xf32> to vector<1x8xf32>
    %43 = vector.broadcast %42 : vector<1x8xf32> to vector<16x8xf32>
    %44 = arith.addf %40, %43 : vector<16x8xf32>
    %c0_26 = arith.constant 0 : index
    %c0_27 = arith.constant 0 : index
    %c0_28 = arith.constant 0 : index
    %45 = vector.load %arg7[%c0_26, %c0_27, %c0_28] : memref<1x32x8xf32, #tpu.memory_space<vmem>>, vector<1x32x8xf32>
    %46 = vector.shape_cast %45 : vector<1x32x8xf32> to vector<32x8xf32>
    %cst_29 = arith.constant dense<0.000000e+00> : vector<16x8xf32>
    %47 = tpu.matmul %28, %46, %cst_29 {dimension_numbers = #tpu.dot_dimension_numbers<[1], [0], [0], [1], [0, 0, 1, 1], [], []>} : vector<16x32xf32>, vector<32x8xf32>, vector<16x8xf32> -> vector<16x8xf32>
    %c0_30 = arith.constant 0 : index
    %c0_31 = arith.constant 0 : index
    %c0_32 = arith.constant 0 : index
    %48 = vector.load %arg10[%c0_30, %c0_31, %c0_32] : memref<1x1x8xf32, #tpu.memory_space<vmem>>, vector<1x1x8xf32>
    %49 = vector.shape_cast %48 : vector<1x1x8xf32> to vector<1x8xf32>
    %50 = vector.broadcast %49 : vector<1x8xf32> to vector<16x8xf32>
    %51 = arith.addf %47, %50 : vector<16x8xf32>
    %cst_33 = arith.constant dense<0.000000e+00> : vector<16x16xf32>
    %52 = tpu.matmul %37, %44, %cst_33 {dimension_numbers = #tpu.dot_dimension_numbers<[1], [1], [0], [0], [0, 0, 1, 0], [], []>} : vector<16x8xf32>, vector<16x8xf32>, vector<16x16xf32> -> vector<16x16xf32>
    %c0_34 = arith.constant 0 : index
    %c0_35 = arith.constant 0 : index
    %c0_36 = arith.constant 0 : index
    %c0_37 = arith.constant 0 : index
    %53 = vector.load %arg13[%c0_34, %c0_35, %c0_36, %c0_37] : memref<1x1x16x16xf32, #tpu.memory_space<vmem>>, vector<1x1x16x16xf32>
    %54 = vector.shape_cast %53 : vector<1x1x16x16xf32> to vector<16x16xf32>
    %55 = arith.addf %52, %54 : vector<16x16xf32>
    %cst_38 = arith.constant dense<0xFF800000> : vector<16xf32>
    %56 = vector.multi_reduction <maximumf>, %55, %cst_38 [1] : vector<16x16xf32> to vector<16xf32>
    %57 = vector.shape_cast %56 : vector<16xf32> to vector<16x1xf32>
    %58 = vector.broadcast %57 : vector<16x1xf32> to vector<16x16xf32>
    %59 = arith.subf %55, %58 : vector<16x16xf32>
    %60 = math.exp %59 : vector<16x16xf32>
    %cst_39 = arith.constant dense<0.000000e+00> : vector<16xf32>
    %61 = vector.multi_reduction <add>, %60, %cst_39 [1] : vector<16x16xf32> to vector<16xf32>
    %62 = vector.shape_cast %61 : vector<16xf32> to vector<16x1xf32>
    %63 = vector.broadcast %62 : vector<16x1xf32> to vector<16x16xf32>
    %64 = arith.divf %60, %63 : vector<16x16xf32>
    %cst_40 = arith.constant dense<0.000000e+00> : vector<16x8xf32>
    %65 = tpu.matmul %64, %51, %cst_40 {dimension_numbers = #tpu.dot_dimension_numbers<[1], [0], [0], [1], [0, 0, 1, 1], [], []>} : vector<16x16xf32>, vector<16x8xf32>, vector<16x8xf32> -> vector<16x8xf32>
    %c0_41 = arith.constant 0 : index
    %c0_42 = arith.constant 0 : index
    %66 = vector.load %arg15[%c0_41, %c0_42] : memref<16x32xf32, #tpu.memory_space<vmem>>, vector<16x32xf32>
    %c0_43 = arith.constant 0 : index
    %c0_44 = arith.constant 0 : index
    %c0_45 = arith.constant 0 : index
    %67 = vector.load %arg11[%c0_43, %c0_44, %c0_45] : memref<1x8x32xf32, #tpu.memory_space<vmem>>, vector<1x8x32xf32>
    %68 = vector.shape_cast %67 : vector<1x8x32xf32> to vector<8x32xf32>
    %cst_46 = arith.constant dense<0.000000e+00> : vector<16x32xf32>
    %69 = tpu.matmul %65, %68, %cst_46 {dimension_numbers = #tpu.dot_dimension_numbers<[1], [0], [0], [1], [0, 0, 1, 1], [], []>} : vector<16x8xf32>, vector<8x32xf32>, vector<16x32xf32> -> vector<16x32xf32>
    %70 = arith.addf %66, %69 : vector<16x32xf32>
    %c0_47 = arith.constant 0 : index
    %c0_48 = arith.constant 0 : index
    %71 = vector.load %arg15[%c0_47, %c0_48] : memref<16x32xf32, #tpu.memory_space<vmem>>, vector<16x32xf32>
    tpu.vector_store %arg15[%c0_47, %c0_48], %70 {strides = array<i32>} : memref<16x32xf32, #tpu.memory_space<vmem>>, vector<16x32xf32>,
    %c3_i32 = arith.constant 3 : i32
    %72 = arith.cmpi eq, %arg1, %c3_i32 : i32
    %73 = arith.extui %72 : i1 to i32
    %c0_i32_49 = arith.constant 0 : i32
    %74 = arith.cmpi ne, %73, %c0_i32_49 : i32
    scf.if %74 {
      %c0_50 = arith.constant 0 : index
      %c0_51 = arith.constant 0 : index
      %75 = vector.load %arg15[%c0_50, %c0_51] : memref<16x32xf32, #tpu.memory_space<vmem>>, vector<16x32xf32>
      %c0_52 = arith.constant 0 : index
      %c0_53 = arith.constant 0 : index
      %76 = vector.load %arg12[%c0_52, %c0_53] : memref<1x32xf32, #tpu.memory_space<vmem>>, vector<1x32xf32>
      %77 = vector.broadcast %76 : vector<1x32xf32> to vector<16x32xf32>
      %78 = arith.addf %75, %77 : vector<16x32xf32>
      %c0_54 = arith.constant 0 : index
      %c0_55 = arith.constant 0 : index
      %c0_56 = arith.constant 0 : index
      %79 = vector.load %arg14[%c0_54, %c0_55, %c0_56] : memref<1x16x32xf32, #tpu.memory_space<vmem>>, vector<1x16x32xf32>
      %80 = vector.shape_cast %79 : vector<1x16x32xf32> to vector<16x32xf32>
      %81 = vector.shape_cast %78 : vector<16x32xf32> to vector<1x16x32xf32>
      tpu.vector_store %arg14[%c0_54, %c0_55, %c0_56], %81 {strides = array<i32>} : memref<1x16x32xf32, #tpu.memory_space<vmem>>, vector<1x16x32xf32>,
    } else {
    }
    return
  }
  func.func @transform_0(%arg0: i32, %arg1: i32) -> (i32, i32, i32) {
    %c0_i32 = arith.constant 0 : i32
    %c0_i32_0 = arith.constant 0 : i32
    %c0_i32_1 = arith.constant 0 : i32
    return %arg0, %c0_i32, %c0_i32_0 : i32, i32, i32
  }
  func.func @transform_1(%arg0: i32, %arg1: i32) -> (i32, i32) {
    %c0_i32 = arith.constant 0 : i32
    %c0_i32_0 = arith.constant 0 : i32
    %c0_i32_1 = arith.constant 0 : i32
    return %c0_i32, %c0_i32_0 : i32, i32
  }
  func.func @transform_2(%arg0: i32, %arg1: i32) -> (i32, i32) {
    %c0_i32 = arith.constant 0 : i32
    %c0_i32_0 = arith.constant 0 : i32
    %c0_i32_1 = arith.constant 0 : i32
    return %c0_i32, %c0_i32_0 : i32, i32
  }
  func.func @transform_3(%arg0: i32, %arg1: i32) -> (i32, i32, i32) {
    %c0_i32 = arith.constant 0 : i32
    %c0_i32_0 = arith.constant 0 : i32
    %c0_i32_1 = arith.constant 0 : i32
    return %arg1, %c0_i32, %c0_i32_0 : i32, i32, i32
  }
  func.func @transform_4(%arg0: i32, %arg1: i32) -> (i32, i32, i32) {
    %c0_i32 = arith.constant 0 : i32
    %c0_i32_0 = arith.constant 0 : i32
    %c0_i32_1 = arith.constant 0 : i32
    return %arg1, %c0_i32, %c0_i32_0 : i32, i32, i32
  }
  func.func @transform_5(%arg0: i32, %arg1: i32) -> (i32, i32, i32) {
    %c0_i32 = arith.constant 0 : i32
    %c0_i32_0 = arith.constant 0 : i32
    %c0_i32_1 = arith.constant 0 : i32
    return %arg1, %c0_i32, %c0_i32_0 : i32, i32, i32
  }
  func.func @transform_6(%arg0: i32, %arg1: i32) -> (i32, i32, i32) {
    %c0_i32 = arith.constant 0 : i32
    %c0_i32_0 = arith.constant 0 : i32
    %c0_i32_1 = arith.constant 0 : i32
    return %arg1, %c0_i32, %c0_i32_0 : i32, i32, i32
  }
  func.func @transform_7(%arg0: i32, %arg1: i32) -> (i32, i32, i32) {
    %c0_i32 = arith.constant 0 : i32
    %c0_i32_0 = arith.constant 0 : i32
    %c0_i32_1 = arith.constant 0 : i32
    return %arg1, %c0_i32, %c0_i32_0 : i32, i32, i32
  }
  func.func @transform_8(%arg0: i32, %arg1: i32) -> (i32, i32, i32) {
    %c0_i32 = arith.constant 0 : i32
    %c0_i32_0 = arith.constant 0 : i32
    %c0_i32_1 = arith.constant 0 : i32
    return %arg1, %c0_i32, %c0_i32_0 : i32, i32, i32
  }
  func.func @transform_9(%arg0: i32, %arg1: i32) -> (i32, i32, i32) {
    %c0_i32 = arith.constant 0 : i32
    %c0_i32_0 = arith.constant 0 : i32
    %c0_i32_1 = arith.constant 0 : i32
    return %arg1, %c0_i32, %c0_i32_0 : i32, i32, i32
  }
  func.func @transform_10(%arg0: i32, %arg1: i32) -> (i32, i32) {
    %c0_i32 = arith.constant 0 : i32
    %c0_i32_0 = arith.constant 0 : i32
    %c0_i32_1 = arith.constant 0 : i32
    return %c0_i32, %c0_i32_0 : i32, i32
  }
  func.func @transform_11(%arg0: i32, %arg1: i32) -> (i32, i32, i32, i32) {
    %c4_i32 = arith.constant 4 : i32
    %c0_i32 = arith.constant 0 : i32
    %0 = arith.cmpi eq, %c4_i32, %c0_i32 : i32
    %c1_i32 = arith.constant 1 : i32
    %1 = arith.select %0, %c1_i32, %c4_i32 : i32
    %2 = arith.remsi %arg0, %1 : i32
    %c0_i32_0 = arith.constant 0 : i32
    %3 = arith.cmpi ne, %2, %c0_i32_0 : i32
    %c0_i32_1 = arith.constant 0 : i32
    %4 = arith.cmpi slt, %2, %c0_i32_1 : i32
    %c0_i32_2 = arith.constant 0 : i32
    %5 = arith.cmpi slt, %1, %c0_i32_2 : i32
    %6 = arith.xori %4, %5 : i1
    %7 = arith.andi %6, %3 : i1
    %8 = arith.addi %2, %1 : i32
    %9 = arith.select %7, %8, %2 : i32
    %c0_i32_3 = arith.constant 0 : i32
    %c0_i32_4 = arith.constant 0 : i32
    %c0_i32_5 = arith.constant 0 : i32
    return %9, %arg1, %c0_i32_3, %c0_i32_4 : i32, i32, i32, i32
  }
  func.func @transform_12(%arg0: i32, %arg1: i32) -> (i32, i32, i32) {
    %c0_i32 = arith.constant 0 : i32
    %c0_i32_0 = arith.constant 0 : i32
    %c0_i32_1 = arith.constant 0 : i32
    return %arg0, %c0_i32, %c0_i32_0 : i32, i32, i32
  }
}

</mosaic_0001>

<llo_original>
// kernel: tpu_custom_call.1
$region0: #{tpu_custom_call.1}
  #allocation0 [shape = 'u32[]', space=smem, size = 0x4, offset = 0x4, fixed_abs, tag = 'smem constant byte address 0x4 - core index']
  #allocation1 [shape = 'u32[144,128]{1,0:T(1,128)}', space=vmem, size = 0x12000, scoped, tag = 'internal scratch']
  #allocation2 [shape = 'f32[16,32]{1,0:T(8,128)}', space=vmem, size = 0x2000, scoped, tag = 'scratch operand']
  %s0 = inlined_call_operand.vmem [shape: f32[8,16,32], index: 0, kind: input, shape index: {}]
  %s1 = inlined_call_operand.vmem [shape: f32[1,32], index: 1, kind: input, shape index: {}]
  %s2 = inlined_call_operand.vmem [shape: f32[1,32], index: 2, kind: input, shape index: {}]
  %s3 = inlined_call_operand.vmem [shape: f32[4,32,8], index: 3, kind: input, shape index: {}]
  %s4 = inlined_call_operand.vmem [shape: f32[4,32,8], index: 4, kind: input, shape index: {}]
  %s5 = inlined_call_operand.vmem [shape: f32[4,32,8], index: 5, kind: input, shape index: {}]
  %s6 = inlined_call_operand.vmem [shape: f32[4,1,8], index: 6, kind: input, shape index: {}]
  %s7 = inlined_call_operand.vmem [shape: f32[4,1,8], index: 7, kind: input, shape index: {}]
  %s8 = inlined_call_operand.vmem [shape: f32[4,1,8], index: 8, kind: input, shape index: {}]
  %s9 = inlined_call_operand.vmem [shape: f32[4,8,32], index: 9, kind: input, shape index: {}]
  %s10 = inlined_call_operand.vmem [shape: f32[1,32], index: 10, kind: input, shape index: {}]
  %s11 = inlined_call_operand.vmem [shape: f32[4,4,16,16], index: 11, kind: input, shape index: {}]
  %s12 = inlined_call_operand.hbm [shape: f32[8,16,32], index: 12, kind: output, shape index: {}]
  %s13 = sld [smem:[#allocation0]]
  $region89: #{tpu_custom_call.1} parent=0
    _
  %s15 = ssub.s32 1, %s13
  %s16 = scalar_select 0, %s15, %s13
  $region1: #{tpu_custom_call.1} parent=0
    #allocation3 [shape = 'u8[16384]{0}', space=vmem, size = 0x4000, scoped, tag = 'output window, operand 0']
    #allocation4 [shape = 's32[2]{0}', space=sflag, size = 0x8, scoped, tag = 'scoped memory for tpu_custom_call.1']
    %17 = vsyncpa [#allocation4], 0
    %s18 = scalar_lea.sflag [#allocation4], 1
    %19 = vsyncpa %s18, 0
    loop: start=0, step=1, limit=34
    $region2: #{tpu_custom_call.1} parent=1 // loop_pre_header
      _
    $region3: #{tpu_custom_call.1} parent=1 // loop_header
      %s21 = sphi 0, %s25
      %p22 = scmp.ge.s32.totalorder %s21, 34
      %s28 = sphi 0, %s40
      %s29 = sphi 0, %s36
      %s30 = sphi 0, %s28
      %s31 = sphi 0, %s29
      %s32 = sphi 0, %s30
      %s33 = sphi 0, %s31
      %s43 = sphi 0, %s45
      %s46 = sphi 0, %s43
      %s47 = sphi 0, %s46
      %s63 = sphi 0, %s47
      %s67 = sphi 0, %s67
      %s69 = sphi 0, %s67
      %s70 = sphi 0, %s69
      %s84 = sphi 0, %s70
      %s88 = sphi 0, %s88
      %s90 = sphi 0, %s88
      %s91 = sphi 0, %s90
      %s105 = sphi 0, %s91
      %s111 = sphi 0, %s113
      %s114 = sphi 0, %s111
      %s115 = sphi 0, %s114
      %s131 = sphi 0, %s115
      %s137 = sphi 0, %s139
      %s140 = sphi 0, %s137
      %s141 = sphi 0, %s140
      %s157 = sphi 0, %s141
      %s163 = sphi 0, %s165
      %s166 = sphi 0, %s163
      %s167 = sphi 0, %s166
      %s183 = sphi 0, %s167
      %s189 = sphi 0, %s191
      %s192 = sphi 0, %s189
      %s193 = sphi 0, %s192
      %s209 = sphi 0, %s193
      %s215 = sphi 0, %s217
      %s218 = sphi 0, %s215
      %s219 = sphi 0, %s218
      %s235 = sphi 0, %s219
      %s241 = sphi 0, %s243
      %s244 = sphi 0, %s241
      %s245 = sphi 0, %s244
      %s261 = sphi 0, %s245
      %s267 = sphi 0, %s269
      %s270 = sphi 0, %s267
      %s271 = sphi 0, %s270
      %s287 = sphi 0, %s271
      %s291 = sphi 0, %s291
      %s293 = sphi 0, %s291
      %s294 = sphi 0, %s293
      %s308 = sphi 0, %s294
      %s340 = sphi 0, %s342
      %s343 = sphi 0, %s340
      %s344 = sphi 0, %s343
      %s360 = sphi 0, %s344
      %s366 = sphi 0, %s368
      %s369 = sphi 0, %s366
      %s370 = sphi 0, %s369
      %s386 = sphi 0, %s370
    $region4: #{tpu_custom_call.1} parent=1 // loop_header_branch
      %24 = sbr.rel (%p22) target = $region8
    $region5: #{tpu_custom_call.1} parent=1 // loop_body
      %s26 = ssub.s32 %s21, 1
      %s27 = ssub.s32 %s21, 2
      %s34 = sadd.s32 1, %s29
      %p35 = scmp.ge.s32.totalorder %s34, 4
      %s36 = scalar_select %p35, 0, %s34
      %s37 = sadd.s32 1, %s28
      %s38 = scalar_select %p35, %s37, %s28
      %p39 = scmp.ge.s32.totalorder %s38, 8
      %s40 = scalar_select %p39, 0, %s38
      %s41 = ssub.s32 %s28, %s40
      %p42 = scmp.eq.s32.totalorder %s41, 0
      %s44 = sadd.s32 %s43, 1
      %s45 = scalar_select %p42, %s43, %s44
      %p48 = pneg %p42
      %p49 = scmp.eq.s32.totalorder %s21, 31
      %p50 = por %p48, %p49
      %p51 = scmp.ne.s32.totalorder %s43, %s46
      %p52 = scmp.eq.s32.totalorder %s21, 0
      %p53 = por %p51, %p52
      %p54 = scmp.ne.s32.totalorder %s43, %s46
      %p55 = scmp.eq.s32.totalorder %s26, 31
      %p56 = por %p54, %p55
      %p57 = scmp.ne.s32.totalorder %s46, %s47
      %p58 = scmp.eq.s32.totalorder %s26, 0
      %p59 = por %p57, %p58
      %p60 = scmp.ne.s32.totalorder %s46, %s47
      %p61 = scmp.eq.s32.totalorder %s27, 31
      %p62 = por %p60, %p61
      %p64 = scmp.ne.s32.totalorder %s47, %s63
      %p65 = scmp.eq.s32.totalorder %s27, 0
      %p66 = por %p64, %p65
      %s68 = sadd.s32 %s67, 1
      %p71 = scmp.eq.s32.totalorder %s21, 31
      %p72 = scmp.ne.s32.totalorder %s67, %s69
      %p73 = scmp.eq.s32.totalorder %s21, 0
      %p74 = por %p72, %p73
      %p75 = scmp.ne.s32.totalorder %s67, %s69
      %p76 = scmp.eq.s32.totalorder %s26, 31
      %p77 = por %p75, %p76
      %p78 = scmp.ne.s32.totalorder %s69, %s70
      %p79 = scmp.eq.s32.totalorder %s26, 0
      %p80 = por %p78, %p79
      %p81 = scmp.ne.s32.totalorder %s69, %s70
      %p82 = scmp.eq.s32.totalorder %s27, 31
      %p83 = por %p81, %p82
      %p85 = scmp.ne.s32.totalorder %s70, %s84
      %p86 = scmp.eq.s32.totalorder %s27, 0
      %p87 = por %p85, %p86
      %s89 = sadd.s32 %s88, 1
      %p92 = scmp.eq.s32.totalorder %s21, 31
      %p93 = scmp.ne.s32.totalorder %s88, %s90
      %p94 = scmp.eq.s32.totalorder %s21, 0
      %p95 = por %p93, %p94
      %p96 = scmp.ne.s32.totalorder %s88, %s90
      %p97 = scmp.eq.s32.totalorder %s26, 31
      %p98 = por %p96, %p97
      %p99 = scmp.ne.s32.totalorder %s90, %s91
      %p100 = scmp.eq.s32.totalorder %s26, 0
      %p101 = por %p99, %p100
      %p102 = scmp.ne.s32.totalorder %s90, %s91
      %p103 = scmp.eq.s32.totalorder %s27, 31
      %p104 = por %p102, %p103
      %p106 = scmp.ne.s32.totalorder %s91, %s105
      %p107 = scmp.eq.s32.totalorder %s27, 0
      %p108 = por %p106, %p107
      %s109 = ssub.s32 %s29, %s36
      %p110 = scmp.eq.s32.totalorder %s109, 0
      %s112 = sadd.s32 %s111, 1
      %s113 = scalar_select %p110, %s111, %s112
      %p116 = pneg %p110
      %p117 = scmp.eq.s32.totalorder %s21, 31
      %p118 = por %p116, %p117
      %p119 = scmp.ne.s32.totalorder %s111, %s114
      %p120 = scmp.eq.s32.totalorder %s21, 0
      %p121 = por %p119, %p120
      %p122 = scmp.ne.s32.totalorder %s111, %s114
      %p123 = scmp.eq.s32.totalorder %s26, 31
      %p124 = por %p122, %p123
      %p125 = scmp.ne.s32.totalorder %s114, %s115
      %p126 = scmp.eq.s32.totalorder %s26, 0
      %p127 = por %p125, %p126
      %p128 = scmp.ne.s32.totalorder %s114, %s115
      %p129 = scmp.eq.s32.totalorder %s27, 31
      %p130 = por %p128, %p129
      %p132 = scmp.ne.s32.totalorder %s115, %s131
      %p133 = scmp.eq.s32.totalorder %s27, 0
      %p134 = por %p132, %p133
      %s135 = ssub.s32 %s29, %s36
      %p136 = scmp.eq.s32.totalorder %s135, 0
      %s138 = sadd.s32 %s137, 1
      %s139 = scalar_select %p136, %s137, %s138
      %p142 = pneg %p136
      %p143 = scmp.eq.s32.totalorder %s21, 31
      %p144 = por %p142, %p143
      %p145 = scmp.ne.s32.totalorder %s137, %s140
      %p146 = scmp.eq.s32.totalorder %s21, 0
      %p147 = por %p145, %p146
      %p148 = scmp.ne.s32.totalorder %s137, %s140
      %p149 = scmp.eq.s32.totalorder %s26, 31
      %p150 = por %p148, %p149
      %p151 = scmp.ne.s32.totalorder %s140, %s141
      %p152 = scmp.eq.s32.totalorder %s26, 0
      %p153 = por %p151, %p152
      %p154 = scmp.ne.s32.totalorder %s140, %s141
      %p155 = scmp.eq.s32.totalorder %s27, 31
      %p156 = por %p154, %p155
      %p158 = scmp.ne.s32.totalorder %s141, %s157
      %p159 = scmp.eq.s32.totalorder %s27, 0
      %p160 = por %p158, %p159
      %s161 = ssub.s32 %s29, %s36
      %p162 = scmp.eq.s32.totalorder %s161, 0
      %s164 = sadd.s32 %s163, 1
      %s165 = scalar_select %p162, %s163, %s164
      %p168 = pneg %p162
      %p169 = scmp.eq.s32.totalorder %s21, 31
      %p170 = por %p168, %p169
      %p171 = scmp.ne.s32.totalorder %s163, %s166
      %p172 = scmp.eq.s32.totalorder %s21, 0
      %p173 = por %p171, %p172
      %p174 = scmp.ne.s32.totalorder %s163, %s166
      %p175 = scmp.eq.s32.totalorder %s26, 31
      %p176 = por %p174, %p175
      %p177 = scmp.ne.s32.totalorder %s166, %s167
      %p178 = scmp.eq.s32.totalorder %s26, 0
      %p179 = por %p177, %p178
      %p180 = scmp.ne.s32.totalorder %s166, %s167
      %p181 = scmp.eq.s32.totalorder %s27, 31
      %p182 = por %p180, %p181
      %p184 = scmp.ne.s32.totalorder %s167, %s183
      %p185 = scmp.eq.s32.totalorder %s27, 0
      %p186 = por %p184, %p185
      %s187 = ssub.s32 %s29, %s36
      %p188 = scmp.eq.s32.totalorder %s187, 0
      %s190 = sadd.s32 %s189, 1
      %s191 = scalar_select %p188, %s189, %s190
      %p194 = pneg %p188
      %p195 = scmp.eq.s32.totalorder %s21, 31
      %p196 = por %p194, %p195
      %p197 = scmp.ne.s32.totalorder %s189, %s192
      %p198 = scmp.eq.s32.totalorder %s21, 0
      %p199 = por %p197, %p198
      %p200 = scmp.ne.s32.totalorder %s189, %s192
      %p201 = scmp.eq.s32.totalorder %s26, 31
      %p202 = por %p200, %p201
      %p203 = scmp.ne.s32.totalorder %s192, %s193
      %p204 = scmp.eq.s32.totalorder %s26, 0
      %p205 = por %p203, %p204
      %p206 = scmp.ne.s32.totalorder %s192, %s193
      %p207 = scmp.eq.s32.totalorder %s27, 31
      %p208 = por %p206, %p207
      %p210 = scmp.ne.s32.totalorder %s193, %s209
      %p211 = scmp.eq.s32.totalorder %s27, 0
      %p212 = por %p210, %p211
      %s213 = ssub.s32 %s29, %s36
      %p214 = scmp.eq.s32.totalorder %s213, 0
      %s216 = sadd.s32 %s215, 1
      %s217 = scalar_select %p214, %s215, %s216
      %p220 = pneg %p214
      %p221 = scmp.eq.s32.totalorder %s21, 31
      %p222 = por %p220, %p221
      %p223 = scmp.ne.s32.totalorder %s215, %s218
      %p224 = scmp.eq.s32.totalorder %s21, 0
      %p225 = por %p223, %p224
      %p226 = scmp.ne.s32.totalorder %s215, %s218
      %p227 = scmp.eq.s32.totalorder %s26, 31
      %p228 = por %p226, %p227
      %p229 = scmp.ne.s32.totalorder %s218, %s219
      %p230 = scmp.eq.s32.totalorder %s26, 0
      %p231 = por %p229, %p230
      %p232 = scmp.ne.s32.totalorder %s218, %s219
      %p233 = scmp.eq.s32.totalorder %s27, 31
      %p234 = por %p232, %p233
      %p236 = scmp.ne.s32.totalorder %s219, %s235
      %p237 = scmp.eq.s32.totalorder %s27, 0
      %p238 = por %p236, %p237
      %s239 = ssub.s32 %s29, %s36
      %p240 = scmp.eq.s32.totalorder %s239, 0
      %s242 = sadd.s32 %s241, 1
      %s243 = scalar_select %p240, %s241, %s242
      %p246 = pneg %p240
      %p247 = scmp.eq.s32.totalorder %s21, 31
      %p248 = por %p246, %p247
      %p249 = scmp.ne.s32.totalorder %s241, %s244
      %p250 = scmp.eq.s32.totalorder %s21, 0
      %p251 = por %p249, %p250
      %p252 = scmp.ne.s32.totalorder %s241, %s244
      %p253 = scmp.eq.s32.totalorder %s26, 31
      %p254 = por %p252, %p253
      %p255 = scmp.ne.s32.totalorder %s244, %s245
      %p256 = scmp.eq.s32.totalorder %s26, 0
      %p257 = por %p255, %p256
      %p258 = scmp.ne.s32.totalorder %s244, %s245
      %p259 = scmp.eq.s32.totalorder %s27, 31
      %p260 = por %p258, %p259
      %p262 = scmp.ne.s32.totalorder %s245, %s261
      %p263 = scmp.eq.s32.totalorder %s27, 0
      %p264 = por %p262, %p263
      %s265 = ssub.s32 %s29, %s36
      %p266 = scmp.eq.s32.totalorder %s265, 0
      %s268 = sadd.s32 %s267, 1
      %s269 = scalar_select %p266, %s267, %s268
      %p272 = pneg %p266
      %p273 = scmp.eq.s32.totalorder %s21, 31
      %p274 = por %p272, %p273
      %p275 = scmp.ne.s32.totalorder %s267, %s270
      %p276 = scmp.eq.s32.totalorder %s21, 0
      %p277 = por %p275, %p276
      %p278 = scmp.ne.s32.totalorder %s267, %s270
      %p279 = scmp.eq.s32.totalorder %s26, 31
      %p280 = por %p278, %p279
      %p281 = scmp.ne.s32.totalorder %s270, %s271
      %p282 = scmp.eq.s32.totalorder %s26, 0
      %p283 = por %p281, %p282
      %p284 = scmp.ne.s32.totalorder %s270, %s271
      %p285 = scmp.eq.s32.totalorder %s27, 31
      %p286 = por %p284, %p285
      %p288 = scmp.ne.s32.totalorder %s271, %s287
      %p289 = scmp.eq.s32.totalorder %s27, 0
      %p290 = por %p288, %p289
      %s292 = sadd.s32 %s291, 1
      %p295 = scmp.eq.s32.totalorder %s21, 31
      %p296 = scmp.ne.s32.totalorder %s291, %s293
      %p297 = scmp.eq.s32.totalorder %s21, 0
      %p298 = por %p296, %p297
      %p299 = scmp.ne.s32.totalorder %s291, %s293
      %p300 = scmp.eq.s32.totalorder %s26, 31
      %p301 = por %p299, %p300
      %p302 = scmp.ne.s32.totalorder %s293, %s294
      %p303 = scmp.eq.s32.totalorder %s26, 0
      %p304 = por %p302, %p303
      %p305 = scmp.ne.s32.totalorder %s293, %s294
      %p306 = scmp.eq.s32.totalorder %s27, 31
      %p307 = por %p305, %p306
      %p309 = scmp.ne.s32.totalorder %s294, %s308
      %p310 = scmp.eq.s32.totalorder %s27, 0
      %p311 = por %p309, %p310
      %p312 = scmp.lt.s32.totalorder %s28, 0
      %s313 = ssub.s32 0, %s28
      %s314 = scalar_select %p312, %s313, %s28
      %s315 = sand.u32 %s314, 3
      %s316 = ssub.s32 0, %s315
      %s317 = scalar_select %p312, %s316, %s315
      %p318 = scmp.ne.s32.totalorder %s317, 0
      %p319 = scmp.lt.s32.totalorder %s317, 0
      %p320 = pnand %p319, %p318
      %p321 = pneg %p320
      %s322 = sadd.s32 %s317, 4
      %s323 = scalar_select %p321, %s322, %s317
      %p324 = scmp.lt.s32.totalorder %s40, 0
      %s325 = ssub.s32 0, %s40
      %s326 = scalar_select %p324, %s325, %s40
      %s327 = sand.u32 %s326, 3
      %s328 = ssub.s32 0, %s327
      %s329 = scalar_select %p324, %s328, %s327
      %p330 = scmp.ne.s32.totalorder %s329, 0
      %p331 = scmp.lt.s32.totalorder %s329, 0
      %p332 = pnand %p331, %p330
      %p333 = pneg %p332
      %s334 = sadd.s32 %s329, 4
      %s335 = scalar_select %p333, %s334, %s329
      %s336 = ssub.s32 %s323, %s335
      %s337 = ssub.s32 %s29, %s36
      %s338 = sor.u32 %s336, %s337
      %p339 = scmp.eq.s32.totalorder %s338, 0
      %s341 = sadd.s32 %s340, 1
      %s342 = scalar_select %p339, %s340, %s341
      %p345 = pneg %p339
      %p346 = scmp.eq.s32.totalorder %s21, 31
      %p347 = por %p345, %p346
      %p348 = scmp.ne.s32.totalorder %s340, %s343
      %p349 = scmp.eq.s32.totalorder %s21, 0
      %p350 = por %p348, %p349
      %p351 = scmp.ne.s32.totalorder %s340, %s343
      %p352 = scmp.eq.s32.totalorder %s26, 31
      %p353 = por %p351, %p352
      %p354 = scmp.ne.s32.totalorder %s343, %s344
      %p355 = scmp.eq.s32.totalorder %s26, 0
      %p356 = por %p354, %p355
      %p357 = scmp.ne.s32.totalorder %s343, %s344
      %p358 = scmp.eq.s32.totalorder %s27, 31
      %p359 = por %p357, %p358
      %p361 = scmp.ne.s32.totalorder %s344, %s360
      %p362 = scmp.eq.s32.totalorder %s27, 0
      %p363 = por %p361, %p362
      %s364 = ssub.s32 %s28, %s40
      %p365 = scmp.eq.s32.totalorder %s364, 0
      %s367 = sadd.s32 %s366, 1
      %s368 = scalar_select %p365, %s366, %s367
      %p371 = pneg %p365
      %p372 = scmp.eq.s32.totalorder %s21, 31
      %p373 = por %p371, %p372
      %p374 = scmp.ne.s32.totalorder %s366, %s369
      %p375 = scmp.eq.s32.totalorder %s21, 0
      %p376 = por %p374, %p375
      %p377 = scmp.ne.s32.totalorder %s366, %s369
      %p378 = scmp.eq.s32.totalorder %s26, 31
      %p379 = por %p377, %p378
      %p380 = scmp.ne.s32.totalorder %s369, %s370
      %p381 = scmp.eq.s32.totalorder %s26, 0
      %p382 = por %p380, %p381
      %p383 = scmp.ne.s32.totalorder %s369, %s370
      %p384 = scmp.eq.s32.totalorder %s27, 31
      %p385 = por %p383, %p384
      %p387 = scmp.ne.s32.totalorder %s370, %s386
      %p388 = scmp.eq.s32.totalorder %s27, 0
      %p389 = por %p387, %p388
      %p390 = scmp.le.s32.totalorder 1, %s21
      %p391 = scmp.lt.s32.totalorder %s21, 33
      %p392 = pnand %p390, %p391
      %p393 = pneg %p392
      // Predicated region
      $region9: #{tpu_custom_call.1} parent=5 // pred_check
        _
      $region10: #{tpu_custom_call.1} parent=5 // pred_check_branch
        %395 = sbr.rel (%p392) target = $region12
      $region11: #{tpu_custom_call.1} parent=5 // pred_region
        %s396 = ssub.s32 %s21, 1
        // Predicated region
        $region13: #{tpu_custom_call.1} parent=11 // pred_check
          %p397 = pneg %p80
        $region14: #{tpu_custom_call.1} parent=11 // pred_check_branch
          %399 = sbr.rel (%p397) target = $region16
        $region15: #{tpu_custom_call.1} parent=11 // pred_region
          _
        $region16: #{tpu_custom_call.1} parent=11 // pred_fallthru
          _
        // Predicated region
        $region17: #{tpu_custom_call.1} parent=11 // pred_check
          %p400 = pneg %p101
        $region18: #{tpu_custom_call.1} parent=11 // pred_check_branch
          %402 = sbr.rel (%p400) target = $region20
        $region19: #{tpu_custom_call.1} parent=11 // pred_region
          _
        $region20: #{tpu_custom_call.1} parent=11 // pred_fallthru
          _
        // Predicated region
        $region21: #{tpu_custom_call.1} parent=11 // pred_check
          %p403 = pneg %p304
        $region22: #{tpu_custom_call.1} parent=11 // pred_check_branch
          %405 = sbr.rel (%p403) target = $region24
        $region23: #{tpu_custom_call.1} parent=11 // pred_region
          _
        $region24: #{tpu_custom_call.1} parent=11 // pred_fallthru
          _
      $region12: #{tpu_custom_call.1} parent=5 // pred_fallthru
        _
      %p406 = scmp.lt.s32.totalorder %s21, 32
      // Predicated region
      $region25: #{tpu_custom_call.1} parent=5 // pred_check
        %p407 = pneg %p406
      $region26: #{tpu_custom_call.1} parent=5 // pred_check_branch
        %409 = sbr.rel (%p407) target = $region28
      $region27: #{tpu_custom_call.1} parent=5 // pred_region
        // Predicated region
        $region29: #{tpu_custom_call.1} parent=27 // pred_check
          %p410 = pneg %p53
        $region30: #{tpu_custom_call.1} parent=27 // pred_check_branch
          %412 = sbr.rel (%p410) target = $region32
        $region31: #{tpu_custom_call.1} parent=27 // pred_region
          %p413 = scmp.lt.s32.totalorder %s28, 7
          %s414 = scalar_select %p413, %s28, 7
          %s415 = smul.addr %s414, 2
          %s416 = smul.addr %s415, 8
          %s417 = scalar_lea.vmem %s0, %s416
        $region32: #{tpu_custom_call.1} parent=27 // pred_fallthru
          _
        // Predicated region
        $region33: #{tpu_custom_call.1} parent=27 // pred_check
          %p418 = pneg %p121
        $region34: #{tpu_custom_call.1} parent=27 // pred_check_branch
          %420 = sbr.rel (%p418) target = $region36
        $region35: #{tpu_custom_call.1} parent=27 // pred_region
          %p421 = scmp.lt.s32.totalorder %s29, 3
          %s422 = scalar_select %p421, %s29, 3
          %s423 = smul.addr %s422, 4
          %s424 = smul.addr %s423, 8
          %s425 = scalar_lea.vmem %s3, %s424
        $region36: #{tpu_custom_call.1} parent=27 // pred_fallthru
          _
        // Predicated region
        $region37: #{tpu_custom_call.1} parent=27 // pred_check
          %p426 = pneg %p147
        $region38: #{tpu_custom_call.1} parent=27 // pred_check_branch
          %428 = sbr.rel (%p426) target = $region40
        $region39: #{tpu_custom_call.1} parent=27 // pred_region
          %p429 = scmp.lt.s32.totalorder %s29, 3
          %s430 = scalar_select %p429, %s29, 3
          %s431 = smul.addr %s430, 4
          %s432 = smul.addr %s431, 8
          %s433 = scalar_lea.vmem %s4, %s432
        $region40: #{tpu_custom_call.1} parent=27 // pred_fallthru
          _
        // Predicated region
        $region41: #{tpu_custom_call.1} parent=27 // pred_check
          %p434 = pneg %p173
        $region42: #{tpu_custom_call.1} parent=27 // pred_check_branch
          %436 = sbr.rel (%p434) target = $region44
        $region43: #{tpu_custom_call.1} parent=27 // pred_region
          %p437 = scmp.lt.s32.totalorder %s29, 3
          %s438 = scalar_select %p437, %s29, 3
          %s439 = smul.addr %s438, 4
          %s440 = smul.addr %s439, 8
          %s441 = scalar_lea.vmem %s5, %s440
        $region44: #{tpu_custom_call.1} parent=27 // pred_fallthru
          _
        // Predicated region
        $region45: #{tpu_custom_call.1} parent=27 // pred_check
          %p442 = pneg %p199
        $region46: #{tpu_custom_call.1} parent=27 // pred_check_branch
          %444 = sbr.rel (%p442) target = $region48
        $region47: #{tpu_custom_call.1} parent=27 // pred_region
          %p445 = scmp.lt.s32.totalorder %s29, 3
          %s446 = scalar_select %p445, %s29, 3
          %s447 = scalar_lea.vmem %s6, %s446
        $region48: #{tpu_custom_call.1} parent=27 // pred_fallthru
          _
        // Predicated region
        $region49: #{tpu_custom_call.1} parent=27 // pred_check
          %p448 = pneg %p225
        $region50: #{tpu_custom_call.1} parent=27 // pred_check_branch
          %450 = sbr.rel (%p448) target = $region52
        $region51: #{tpu_custom_call.1} parent=27 // pred_region
          %p451 = scmp.lt.s32.totalorder %s29, 3
          %s452 = scalar_select %p451, %s29, 3
          %s453 = scalar_lea.vmem %s7, %s452
        $region52: #{tpu_custom_call.1} parent=27 // pred_fallthru
          _
        // Predicated region
        $region53: #{tpu_custom_call.1} parent=27 // pred_check
          %p454 = pneg %p251
        $region54: #{tpu_custom_call.1} parent=27 // pred_check_branch
          %456 = sbr.rel (%p454) target = $region56
        $region55: #{tpu_custom_call.1} parent=27 // pred_region
          %p457 = scmp.lt.s32.totalorder %s29, 3
          %s458 = scalar_select %p457, %s29, 3
          %s459 = scalar_lea.vmem %s8, %s458
        $region56: #{tpu_custom_call.1} parent=27 // pred_fallthru
          _
        // Predicated region
        $region57: #{tpu_custom_call.1} parent=27 // pred_check
          %p460 = pneg %p277
        $region58: #{tpu_custom_call.1} parent=27 // pred_check_branch
          %462 = sbr.rel (%p460) target = $region60
        $region59: #{tpu_custom_call.1} parent=27 // pred_region
          %p463 = scmp.lt.s32.totalorder %s29, 3
          %s464 = scalar_select %p463, %s29, 3
          %s465 = smul.addr %s464, 8
          %s466 = scalar_lea.vmem %s9, %s465
        $region60: #{tpu_custom_call.1} parent=27 // pred_fallthru
          _
        // Predicated region
        $region61: #{tpu_custom_call.1} parent=27 // pred_check
          %p467 = pneg %p350
        $region62: #{tpu_custom_call.1} parent=27 // pred_check_branch
          %469 = sbr.rel (%p467) target = $region64
        $region63: #{tpu_custom_call.1} parent=27 // pred_region
          %p470 = scmp.lt.s32.totalorder %s28, 0
          %s471 = ssub.s32 0, %s28
          %s472 = scalar_select %p470, %s471, %s28
          %s473 = sand.u32 %s472, 3
          %s474 = ssub.s32 0, %s473
          %s475 = scalar_select %p470, %s474, %s473
          %p476 = scmp.ne.s32.totalorder %s475, 0
          %p477 = scmp.lt.s32.totalorder %s475, 0
          %p478 = pnand %p477, %p476
          %p479 = pneg %p478
          %s480 = sadd.s32 %s475, 4
          %s481 = scalar_select %p479, %s480, %s475
          %p482 = scmp.lt.s32.totalorder %s481, 3
          %s483 = scalar_select %p482, %s481, 3
          %p484 = scmp.lt.s32.totalorder %s29, 3
          %s485 = scalar_select %p484, %s29, 3
          %s486 = smul.addr %s485, 2
          %s487 = smul.addr %s483, 8
          %s488 = sadd.s32 %s486, %s487
          %s489 = smul.addr %s488, 8
          %s490 = scalar_lea.vmem %s11, %s489
          %p491 = scmp.lt.s32.totalorder %s28, 0
          %s492 = ssub.s32 0, %s28
          %s493 = scalar_select %p491, %s492, %s28
          %s494 = sand.u32 %s493, 3
          %s495 = ssub.s32 0, %s494
          %s496 = scalar_select %p491, %s495, %s494
          %p497 = scmp.ne.s32.totalorder %s496, 0
          %p498 = scmp.lt.s32.totalorder %s496, 0
          %p499 = pnand %p498, %p497
          %p500 = pneg %p499
          %s501 = sadd.s32 %s496, 4
          %s502 = scalar_select %p500, %s501, %s496
        $region64: #{tpu_custom_call.1} parent=27 // pred_fallthru
          _
      $region28: #{tpu_custom_call.1} parent=5 // pred_fallthru
        _
      %p503 = scmp.le.s32.totalorder 1, %s21
      %p504 = scmp.lt.s32.totalorder %s21, 33
      %p505 = pnand %p503, %p504
      %p506 = pneg %p505
      // Predicated region
      $region65: #{tpu_custom_call.1} parent=5 // pred_check
        _
      $region66: #{tpu_custom_call.1} parent=5 // pred_check_branch
        %508 = sbr.rel (%p505) target = $region68
      $region67: #{tpu_custom_call.1} parent=5 // pred_region
        %s509 = ssub.s32 %s21, 1
        %p510 = scmp.lt.s32.totalorder %s30, 7
        %s511 = scalar_select %p510, %s30, 7
        %s512 = smul.addr %s511, 2
        %s513 = smul.addr %s512, 8
        %s514 = scalar_lea.vmem %s0, %s513
        %p515 = pneg %p59
        %p516 = pneg %p56
        %p517 = pneg %p80
        %p518 = pneg %p77
        %p519 = pneg %p101
        %p520 = pneg %p98
        %p521 = scmp.lt.s32.totalorder %s31, 3
        %s522 = scalar_select %p521, %s31, 3
        %s523 = smul.addr %s522, 4
        %s524 = smul.addr %s523, 8
        %s525 = scalar_lea.vmem %s3, %s524
        %p526 = pneg %p127
        %p527 = pneg %p124
        %p528 = scmp.lt.s32.totalorder %s31, 3
        %s529 = scalar_select %p528, %s31, 3
        %s530 = smul.addr %s529, 4
        %s531 = smul.addr %s530, 8
        %s532 = scalar_lea.vmem %s4, %s531
        %p533 = pneg %p153
        %p534 = pneg %p150
        %p535 = scmp.lt.s32.totalorder %s31, 3
        %s536 = scalar_select %p535, %s31, 3
        %s537 = smul.addr %s536, 4
        %s538 = smul.addr %s537, 8
        %s539 = scalar_lea.vmem %s5, %s538
        %p540 = pneg %p179
        %p541 = pneg %p176
        %p542 = scmp.lt.s32.totalorder %s31, 3
        %s543 = scalar_select %p542, %s31, 3
        %s544 = scalar_lea.vmem %s6, %s543
        %p545 = pneg %p205
        %p546 = pneg %p202
        %p547 = scmp.lt.s32.totalorder %s31, 3
        %s548 = scalar_select %p547, %s31, 3
        %s549 = scalar_lea.vmem %s7, %s548
        %p550 = pneg %p231
        %p551 = pneg %p228
        %p552 = scmp.lt.s32.totalorder %s31, 3
        %s553 = scalar_select %p552, %s31, 3
        %s554 = scalar_lea.vmem %s8, %s553
        %p555 = pneg %p257
        %p556 = pneg %p254
        %p557 = scmp.lt.s32.totalorder %s31, 3
        %s558 = scalar_select %p557, %s31, 3
        %s559 = smul.addr %s558, 8
        %s560 = scalar_lea.vmem %s9, %s559
        %p561 = pneg %p283
        %p562 = pneg %p280
        %p563 = pneg %p304
        %p564 = pneg %p301
        %p565 = scmp.lt.s32.totalorder %s30, 0
        %s566 = ssub.s32 0, %s30
        %s567 = scalar_select %p565, %s566, %s30
        %s568 = sand.u32 %s567, 3
        %s569 = ssub.s32 0, %s568
        %s570 = scalar_select %p565, %s569, %s568
        %p571 = scmp.ne.s32.totalorder %s570, 0
        %p572 = scmp.lt.s32.totalorder %s570, 0
        %p573 = pnand %p572, %p571
        %p574 = pneg %p573
        %s575 = sadd.s32 %s570, 4
        %s576 = scalar_select %p574, %s575, %s570
        %p577 = scmp.lt.s32.totalorder %s576, 3
        %s578 = scalar_select %p577, %s576, 3
        %p579 = scmp.lt.s32.totalorder %s31, 3
        %s580 = scalar_select %p579, %s31, 3
        %s581 = smul.addr %s580, 2
        %s582 = smul.addr %s578, 8
        %s583 = sadd.s32 %s581, %s582
        %s584 = smul.addr %s583, 8
        %s585 = scalar_lea.vmem %s11, %s584
        %p586 = pneg %p356
        %p587 = pneg %p353
        %p588 = pneg %p382
        %p589 = pneg %p379
        %s590 = sand.u32 %s369, 1
        %s591 = scalar_lea.sflag [#allocation4], %s590
        %s592 = sand.u32 %s369, 1
        %s593 = smul.addr %s592, 16
        %s594 = scalar_lea.vmem [#allocation3], %s593
        %p595 = scmp.lt.s32.totalorder %s30, 7
        %s596 = scalar_select %p595, %s30, 7
        %s597 = smul.addr %s596, 2
        %s598 = smul.addr %s597, 8
        %s599 = scalar_lea.vmem %s0, %s598
        %p600 = scmp.lt.s32.totalorder %s31, 3
        %s601 = scalar_select %p600, %s31, 3
        %s602 = smul.addr %s601, 4
        %s603 = smul.addr %s602, 8
        %s604 = scalar_lea.vmem %s3, %s603
        %p605 = scmp.lt.s32.totalorder %s31, 3
        %s606 = scalar_select %p605, %s31, 3
        %s607 = smul.addr %s606, 4
        %s608 = smul.addr %s607, 8
        %s609 = scalar_lea.vmem %s4, %s608
        %p610 = scmp.lt.s32.totalorder %s31, 3
        %s611 = scalar_select %p610, %s31, 3
        %s612 = smul.addr %s611, 4
        %s613 = smul.addr %s612, 8
        %s614 = scalar_lea.vmem %s5, %s613
        %p615 = scmp.lt.s32.totalorder %s31, 3
        %s616 = scalar_select %p615, %s31, 3
        %s617 = scalar_lea.vmem %s6, %s616
        %p618 = scmp.lt.s32.totalorder %s31, 3
        %s619 = scalar_select %p618, %s31, 3
        %s620 = scalar_lea.vmem %s7, %s619
        %p621 = scmp.lt.s32.totalorder %s31, 3
        %s622 = scalar_select %p621, %s31, 3
        %s623 = scalar_lea.vmem %s8, %s622
        %p624 = scmp.lt.s32.totalorder %s31, 3
        %s625 = scalar_select %p624, %s31, 3
        %s626 = smul.addr %s625, 8
        %s627 = scalar_lea.vmem %s9, %s626
        %p628 = scmp.lt.s32.totalorder %s30, 0
        %s629 = ssub.s32 0, %s30
        %s630 = scalar_select %p628, %s629, %s30
        %s631 = sand.u32 %s630, 3
        %s632 = ssub.s32 0, %s631
        %s633 = scalar_select %p628, %s632, %s631
        %p634 = scmp.ne.s32.totalorder %s633, 0
        %p635 = scmp.lt.s32.totalorder %s633, 0
        %p636 = pnand %p635, %p634
        %p637 = pneg %p636
        %s638 = sadd.s32 %s633, 4
        %s639 = scalar_select %p637, %s638, %s633
        %p640 = scmp.lt.s32.totalorder %s639, 3
        %s641 = scalar_select %p640, %s639, 3
        %p642 = scmp.lt.s32.totalorder %s31, 3
        %s643 = scalar_select %p642, %s31, 3
        %s644 = smul.addr %s643, 2
        %s645 = smul.addr %s641, 8
        %s646 = sadd.s32 %s644, %s645
        %s647 = smul.addr %s646, 8
        %s648 = scalar_lea.vmem %s11, %s647
        %p649 = scmp.lt.s32.totalorder %s30, 0
        %s650 = ssub.s32 0, %s30
        %s651 = scalar_select %p649, %s650, %s30
        %s652 = sand.u32 %s651, 3
        %s653 = ssub.s32 0, %s652
        %s654 = scalar_select %p649, %s653, %s652
        %p655 = scmp.ne.s32.totalorder %s654, 0
        %p656 = scmp.lt.s32.totalorder %s654, 0
        %p657 = pnand %p656, %p655
        %p658 = pneg %p657
        %s659 = sadd.s32 %s654, 4
        %s660 = scalar_select %p658, %s659, %s654
        %p661 = scmp.eq.s32.totalorder %s31, 0
        // Predicated region
        $region69: #{tpu_custom_call.1} parent=67 // pred_check
          %p662 = pneg %p661
        $region70: #{tpu_custom_call.1} parent=67 // pred_check_branch
          %664 = sbr.rel (%p662) target = $region72
        $region71: #{tpu_custom_call.1} parent=67 // pred_region
          %vm665 = vcmask 261120
          %666 = vst.msk [vmem:[#allocation2] sm:$0xff] %vm665, 0.0
          %667 = vst.msk [vmem:[#allocation2 + $0x8] sm:$0xff] %vm665, 0.0
        $region72: #{tpu_custom_call.1} parent=67 // pred_fallthru
          _
        %v668 = vld [vmem:[%s599] sm:$0xff]
        %v669 = vld [vmem:[%s599 + $0x8] sm:$0xff]
        %vm670 = vcmask 261120
        %v671 = vsel %vm670, %v668, 0.0
        %672 = vadd.xlane.f32.xlu0 %v671
        %v673 = vpop.xlane.xlu0 %672
        %v674 = vsel %vm670, %v669, 0.0
        %675 = vadd.xlane.f32.xlu0 %v674
        %v676 = vpop.xlane.xlu0 %675
        %v677 = vrcp.pop 32.0
        %v678 = vmul.f32 %v673, %v677
        %v679 = vmul.f32 %v676, %v677
        %v680 = vsub.f32 %v668, %v678
        %v681 = vsub.f32 %v669, %v679
        %v682 = vmul.f32 %v680, %v680
        %v683 = vmul.f32 %v681, %v681
        %v684 = vsel %vm670, %v682, 0.0
        %685 = vadd.xlane.f32.xlu0 %v684
        %v686 = vpop.xlane.xlu0 %685
        %v687 = vsel %vm670, %v683, 0.0
        %688 = vadd.xlane.f32.xlu0 %v687
        %v689 = vpop.xlane.xlu0 %688
        %v690 = vmul.f32 %v686, %v677
        %v691 = vmul.f32 %v689, %v677
        %v692 = vadd.f32 %v690, 1e-05
        %v693 = vadd.f32 %v691, 1e-05
        %v694 = vrsqrt.pop %v692
        %v695 = vrsqrt.pop %v693
        %v696 = vmul.f32 %v680, %v694
        %v697 = vmul.f32 %v681, %v695
        %v698 = vld [vmem:[%s1] sm:$0x1]
        %v700 = vlaneseq
        %v701 = vshrl.u32 %v700, 7
        %v702 = vsub.s32 0, %v701
        %v703 = vrot.slane %v698, %v702
        %v705 = vmul.f32 %v696, %v703
        %v706 = vmul.f32 %v697, %v703
        %v707 = vld [vmem:[%s2] sm:$0x1]
        %v709 = vlaneseq
        %v710 = vshrl.u32 %v709, 7
        %v711 = vsub.s32 0, %v710
        %v712 = vrot.slane %v707, %v711
        %v714 = vadd.f32 %v705, %v712
        %v715 = vadd.f32 %v706, %v712
        %v716 = vld [vmem:[%s604] sm:$0xff]
        %v717 = vld [vmem:[%s604 + $0x8] sm:$0xff]
        %v718 = vld [vmem:[%s604 + $0x10] sm:$0xff]
        %v719 = vld [vmem:[%s604 + $0x18] sm:$0xff]
        %v720 = vld [vmem:[%s617] sm:$0x1]
        %v722 = vlaneseq
        %v723 = vshrl.u32 %v722, 7
        %v724 = vsub.s32 0, %v723
        %v725 = vrot.slane %v720, %v724
        %v728 = vsel %vm670, %v714, 0
        %v731 = vsel %vm670, %v715, 0
        %733 = vmatprep.subr.mxu0 0.0
        %734 = vmatpush1.msra.mxu0 %v716
        %735 = vmatprep.subr.mxu0 0.0
        %736 = vmatpush1.msra.mxu0 %v717
        %737 = vmatprep.subr.mxu0 0.0
        %738 = vmatpush1.msra.mxu0 %v718
        %739 = vmatprep.subr.mxu0 0.0
        %740 = vmatpush1.msra.mxu0 %v719
        %741 = vmatprep.subr.mxu0 0.0
        %742 = vmatpush1.msra.mxu0 0.0
        %743 = vmatprep.subr.mxu0 0.0
        %744 = vmatpush1.msra.mxu0 0.0
        %745 = vmatprep.subr.mxu0 0.0
        %746 = vmatpush1.msra.mxu0 0.0
        %747 = vmatprep.subr.mxu0 0.0
        %748 = vmatpush1.msra.mxu0 0.0
        %749 = vmatprep.subr.mxu0 0.0
        %750 = vmatpush1.msra.mxu0 0.0
        %751 = vmatprep.subr.mxu0 0.0
        %752 = vmatpush1.msra.mxu0 0.0
        %753 = vmatprep.subr.mxu0 0.0
        %754 = vmatpush1.msra.mxu0 0.0
        %755 = vmatprep.subr.mxu0 0.0
        %756 = vmatpush1.msra.mxu0 0.0
        %757 = vmatprep.subr.mxu0 0.0
        %758 = vmatpush1.msra.mxu0 0.0
        %759 = vmatprep.subr.mxu0 0.0
        %760 = vmatpush1.msra.mxu0 0.0
        %761 = vmatprep.subr.mxu0 0.0
        %762 = vmatpush1.msra.mxu0 0.0
        %763 = vmatprep.subr.mxu0 0.0
        %764 = vmatpush1.msra.mxu0 0.0
        %765 = vmatprep.subr.mxu0 0.0
        %766 = vmatpush1.msra.mxu0 0.0
        %767 = vmatprep.subr.mxu0 0.0
        %768 = vmatpush1.msra.mxu0 0.0
        %769 = vmatprep.subr.mxu0 0.0
        %770 = vmatpush1.msra.mxu0 0.0
        %771 = vmatprep.subr.mxu0 0.0
        %772 = vmatpush1.msra.mxu0 0.0
        %773 = vmatprep.subr.mxu0 0.0
        %774 = vmatpush1.msra.mxu0 0.0
        %775 = vmatprep.subr.mxu0 0.0
        %776 = vmatpush1.msra.mxu0 0.0
        %777 = vmatprep.subr.mxu0 0.0
        %778 = vmatpush1.msra.mxu0 0.0
        %779 = vmatprep.subr.mxu0 0.0
        %780 = vmatpush1.msra.mxu0 0.0
        %781 = vmatprep.subr.mxu0 0.0
        %782 = vmatpush1.msra.mxu0 0.0
        %783 = vmatprep.subr.mxu0 0.0
        %784 = vmatpush1.msra.mxu0 0.0
        %785 = vmatprep.subr.mxu0 0.0
        %786 = vmatpush1.msra.mxu0 0.0
        %787 = vmatprep.subr.mxu0 0.0
        %788 = vmatpush1.msra.mxu0 0.0
        %789 = vmatprep.subr.mxu0 0.0
        %790 = vmatpush1.msra.mxu0 0.0
        %791 = vmatprep.subr.mxu0 0.0
        %792 = vmatpush1.msra.mxu0 0.0
        %793 = vmatprep.subr.mxu0 0.0
        %794 = vmatpush1.msra.mxu0 0.0
        %795 = vmatprep.subr.mxu0 0.0
        %796 = vmatpush1.msra.mxu0 0.0
        %797 = vmatprep.mubr.f32.mxu0 0.0
        %798 = vmatmul.mubr.f32.gmra.mrb[0].mxu0 %v728
        %v799 = vpop.f32.mrb[0].mxu0
        %v800 = vadd.f32 %v725, %v799
        %v801 = vpop.f32.mrb[0].mxu0
        %802 = vmatprep.mubr.f32.mxu0 0.0
        %803 = vmatmul.mubr.f32.gmra.mrb[0].mxu0 %v731
        %v804 = vpop.f32.mrb[0].mxu0
        %v805 = vadd.f32 %v725, %v804
        %v806 = vpop.f32.mrb[0].mxu0
        %807 = vdwg.mxu0
        %v808 = vmul.f32 %v800, 0.35355338
        %v809 = vmul.f32 %v805, 0.35355338
        %v810 = vld [vmem:[%s609] sm:$0xff]
        %v811 = vld [vmem:[%s609 + $0x8] sm:$0xff]
        %v812 = vld [vmem:[%s609 + $0x10] sm:$0xff]
        %v813 = vld [vmem:[%s609 + $0x18] sm:$0xff]
        %v814 = vld [vmem:[%s620] sm:$0x1]
        %v816 = vlaneseq
        %v817 = vshrl.u32 %v816, 7
        %v818 = vsub.s32 0, %v817
        %v819 = vrot.slane %v814, %v818
        %821 = vmatprep.subr.mxu0 0.0
        %822 = vmatpush1.msra.mxu0 %v810
        %823 = vmatprep.subr.mxu0 0.0
        %824 = vmatpush1.msra.mxu0 %v811
        %825 = vmatprep.subr.mxu0 0.0
        %826 = vmatpush1.msra.mxu0 %v812
        %827 = vmatprep.subr.mxu0 0.0
        %828 = vmatpush1.msra.mxu0 %v813
        %829 = vmatprep.subr.mxu0 0.0
        %830 = vmatpush1.msra.mxu0 0.0
        %831 = vmatprep.subr.mxu0 0.0
        %832 = vmatpush1.msra.mxu0 0.0
        %833 = vmatprep.subr.mxu0 0.0
        %834 = vmatpush1.msra.mxu0 0.0
        %835 = vmatprep.subr.mxu0 0.0
        %836 = vmatpush1.msra.mxu0 0.0
        %837 = vmatprep.subr.mxu0 0.0
        %838 = vmatpush1.msra.mxu0 0.0
        %839 = vmatprep.subr.mxu0 0.0
        %840 = vmatpush1.msra.mxu0 0.0
        %841 = vmatprep.subr.mxu0 0.0
        %842 = vmatpush1.msra.mxu0 0.0
        %843 = vmatprep.subr.mxu0 0.0
        %844 = vmatpush1.msra.mxu0 0.0
        %845 = vmatprep.subr.mxu0 0.0
        %846 = vmatpush1.msra.mxu0 0.0
        %847 = vmatprep.subr.mxu0 0.0
        %848 = vmatpush1.msra.mxu0 0.0
        %849 = vmatprep.subr.mxu0 0.0
        %850 = vmatpush1.msra.mxu0 0.0
        %851 = vmatprep.subr.mxu0 0.0
        %852 = vmatpush1.msra.mxu0 0.0
        %853 = vmatprep.subr.mxu0 0.0
        %854 = vmatpush1.msra.mxu0 0.0
        %855 = vmatprep.subr.mxu0 0.0
        %856 = vmatpush1.msra.mxu0 0.0
        %857 = vmatprep.subr.mxu0 0.0
        %858 = vmatpush1.msra.mxu0 0.0
        %859 = vmatprep.subr.mxu0 0.0
        %860 = vmatpush1.msra.mxu0 0.0
        %861 = vmatprep.subr.mxu0 0.0
        %862 = vmatpush1.msra.mxu0 0.0
        %863 = vmatprep.subr.mxu0 0.0
        %864 = vmatpush1.msra.mxu0 0.0
        %865 = vmatprep.subr.mxu0 0.0
        %866 = vmatpush1.msra.mxu0 0.0
        %867 = vmatprep.subr.mxu0 0.0
        %868 = vmatpush1.msra.mxu0 0.0
        %869 = vmatprep.subr.mxu0 0.0
        %870 = vmatpush1.msra.mxu0 0.0
        %871 = vmatprep.subr.mxu0 0.0
        %872 = vmatpush1.msra.mxu0 0.0
        %873 = vmatprep.subr.mxu0 0.0
        %874 = vmatpush1.msra.mxu0 0.0
        %875 = vmatprep.subr.mxu0 0.0
        %876 = vmatpush1.msra.mxu0 0.0
        %877 = vmatprep.subr.mxu0 0.0
        %878 = vmatpush1.msra.mxu0 0.0
        %879 = vmatprep.subr.mxu0 0.0
        %880 = vmatpush1.msra.mxu0 0.0
        %881 = vmatprep.subr.mxu0 0.0
        %882 = vmatpush1.msra.mxu0 0.0
        %883 = vmatprep.subr.mxu0 0.0
        %884 = vmatpush1.msra.mxu0 0.0
        %885 = vmatprep.mubr.f32.mxu0 0.0
        %886 = vmatmul.mubr.f32.gmra.mrb[0].mxu0 %v728
        %v887 = vpop.f32.mrb[0].mxu0
        %v888 = vadd.f32 %v819, %v887
        %v889 = vpop.f32.mrb[0].mxu0
        %890 = vmatprep.mubr.f32.mxu0 0.0
        %891 = vmatmul.mubr.f32.gmra.mrb[0].mxu0 %v731
        %v892 = vpop.f32.mrb[0].mxu0
        %v893 = vadd.f32 %v819, %v892
        %v894 = vpop.f32.mrb[0].mxu0
        %895 = vdwg.mxu0
        %v896 = vld [vmem:[%s614] sm:$0xff]
        %v897 = vld [vmem:[%s614 + $0x8] sm:$0xff]
        %v898 = vld [vmem:[%s614 + $0x10] sm:$0xff]
        %v899 = vld [vmem:[%s614 + $0x18] sm:$0xff]
        %v900 = vld [vmem:[%s623] sm:$0x1]
        %v902 = vlaneseq
        %v903 = vshrl.u32 %v902, 7
        %v904 = vsub.s32 0, %v903
        %v905 = vrot.slane %v900, %v904
        %907 = vmatprep.subr.mxu0 0.0
        %908 = vmatpush1.msra.mxu0 %v896
        %909 = vmatprep.subr.mxu0 0.0
        %910 = vmatpush1.msra.mxu0 %v897
        %911 = vmatprep.subr.mxu0 0.0
        %912 = vmatpush1.msra.mxu0 %v898
        %913 = vmatprep.subr.mxu0 0.0
        %914 = vmatpush1.msra.mxu0 %v899
        %915 = vmatprep.subr.mxu0 0.0
        %916 = vmatpush1.msra.mxu0 0.0
        %917 = vmatprep.subr.mxu0 0.0
        %918 = vmatpush1.msra.mxu0 0.0
        %919 = vmatprep.subr.mxu0 0.0
        %920 = vmatpush1.msra.mxu0 0.0
        %921 = vmatprep.subr.mxu0 0.0
        %922 = vmatpush1.msra.mxu0 0.0
        %923 = vmatprep.subr.mxu0 0.0
        %924 = vmatpush1.msra.mxu0 0.0
        %925 = vmatprep.subr.mxu0 0.0
        %926 = vmatpush1.msra.mxu0 0.0
        %927 = vmatprep.subr.mxu0 0.0
        %928 = vmatpush1.msra.mxu0 0.0
        %929 = vmatprep.subr.mxu0 0.0
        %930 = vmatpush1.msra.mxu0 0.0
        %931 = vmatprep.subr.mxu0 0.0
        %932 = vmatpush1.msra.mxu0 0.0
        %933 = vmatprep.subr.mxu0 0.0
        %934 = vmatpush1.msra.mxu0 0.0
        %935 = vmatprep.subr.mxu0 0.0
        %936 = vmatpush1.msra.mxu0 0.0
        %937 = vmatprep.subr.mxu0 0.0
        %938 = vmatpush1.msra.mxu0 0.0
        %939 = vmatprep.subr.mxu0 0.0
        %940 = vmatpush1.msra.mxu0 0.0
        %941 = vmatprep.subr.mxu0 0.0
        %942 = vmatpush1.msra.mxu0 0.0
        %943 = vmatprep.subr.mxu0 0.0
        %944 = vmatpush1.msra.mxu0 0.0
        %945 = vmatprep.subr.mxu0 0.0
        %946 = vmatpush1.msra.mxu0 0.0
        %947 = vmatprep.subr.mxu0 0.0
        %948 = vmatpush1.msra.mxu0 0.0
        %949 = vmatprep.subr.mxu0 0.0
        %950 = vmatpush1.msra.mxu0 0.0
        %951 = vmatprep.subr.mxu0 0.0
        %952 = vmatpush1.msra.mxu0 0.0
        %953 = vmatprep.subr.mxu0 0.0
        %954 = vmatpush1.msra.mxu0 0.0
        %955 = vmatprep.subr.mxu0 0.0
        %956 = vmatpush1.msra.mxu0 0.0
        %957 = vmatprep.subr.mxu0 0.0
        %958 = vmatpush1.msra.mxu0 0.0
        %959 = vmatprep.subr.mxu0 0.0
        %960 = vmatpush1.msra.mxu0 0.0
        %961 = vmatprep.subr.mxu0 0.0
        %962 = vmatpush1.msra.mxu0 0.0
        %963 = vmatprep.subr.mxu0 0.0
        %964 = vmatpush1.msra.mxu0 0.0
        %965 = vmatprep.subr.mxu0 0.0
        %966 = vmatpush1.msra.mxu0 0.0
        %967 = vmatprep.subr.mxu0 0.0
        %968 = vmatpush1.msra.mxu0 0.0
        %969 = vmatprep.subr.mxu0 0.0
        %970 = vmatpush1.msra.mxu0 0.0
        %971 = vmatprep.mubr.f32.mxu0 0.0
        %972 = vmatmul.mubr.f32.gmra.mrb[0].mxu0 %v728
        %v973 = vpop.f32.mrb[0].mxu0
        %v974 = vadd.f32 %v905, %v973
        %v975 = vpop.f32.mrb[0].mxu0
        %976 = vmatprep.mubr.f32.mxu0 0.0
        %977 = vmatmul.mubr.f32.gmra.mrb[0].mxu0 %v731
        %v978 = vpop.f32.mrb[0].mxu0
        %v979 = vadd.f32 %v905, %v978
        %v980 = vpop.f32.mrb[0].mxu0
        %981 = vdwg.mxu0
        %v982 = vld [vmem:[%s648] sm:$0xff]
        %v983 = vld [vmem:[%s648 + $0x8] sm:$0xff]
        %vm984 = vcmask 64512
        %v986 = vsel %vm984, %v808, 0
        %v989 = vsel %vm984, %v809, 0
        %v992 = vsel %vm984, %v888, 0
        %v995 = vsel %vm984, %v893, 0
        %997 = vmatprep.subr.mxu0 0.0
        %998 = vmatpush1.xpose.msra.mxu0 %v992
        %999 = vmatprep.subr.mxu0 0.0
        %1000 = vmatpush1.xpose.msra.mxu0 %v995
        %1001 = vmatprep.subr.mxu0 0.0
        %1002 = vmatpush1.xpose.msra.mxu0 0.0
        %1003 = vmatprep.subr.mxu0 0.0
        %1004 = vmatpush1.xpose.msra.mxu0 0.0
        %1005 = vmatprep.subr.mxu0 0.0
        %1006 = vmatpush1.xpose.msra.mxu0 0.0
        %1007 = vmatprep.subr.mxu0 0.0
        %1008 = vmatpush1.xpose.msra.mxu0 0.0
        %1009 = vmatprep.subr.mxu0 0.0
        %1010 = vmatpush1.xpose.msra.mxu0 0.0
        %1011 = vmatprep.subr.mxu0 0.0
        %1012 = vmatpush1.xpose.msra.mxu0 0.0
        %1013 = vmatprep.subr.mxu0 0.0
        %1014 = vmatpush1.xpose.msra.mxu0 0.0
        %1015 = vmatprep.subr.mxu0 0.0
        %1016 = vmatpush1.xpose.msra.mxu0 0.0
        %1017 = vmatprep.subr.mxu0 0.0
        %1018 = vmatpush1.xpose.msra.mxu0 0.0
        %1019 = vmatprep.subr.mxu0 0.0
        %1020 = vmatpush1.xpose.msra.mxu0 0.0
        %1021 = vmatprep.subr.mxu0 0.0
        %1022 = vmatpush1.xpose.msra.mxu0 0.0
        %1023 = vmatprep.subr.mxu0 0.0
        %1024 = vmatpush1.xpose.msra.mxu0 0.0
        %1025 = vmatprep.subr.mxu0 0.0
        %1026 = vmatpush1.xpose.msra.mxu0 0.0
        %1027 = vmatprep.subr.mxu0 0.0
        %1028 = vmatpush1.xpose.msra.mxu0 0.0
        %1029 = vmatprep.subr.mxu0 0.0
        %1030 = vmatpush1.xpose.msra.mxu0 0.0
        %1031 = vmatprep.subr.mxu0 0.0
        %1032 = vmatpush1.xpose.msra.mxu0 0.0
        %1033 = vmatprep.subr.mxu0 0.0
        %1034 = vmatpush1.xpose.msra.mxu0 0.0
        %1035 = vmatprep.subr.mxu0 0.0
        %1036 = vmatpush1.xpose.msra.mxu0 0.0
        %1037 = vmatprep.subr.mxu0 0.0
        %1038 = vmatpush1.xpose.msra.mxu0 0.0
        %1039 = vmatprep.subr.mxu0 0.0
        %1040 = vmatpush1.xpose.msra.mxu0 0.0
        %1041 = vmatprep.subr.mxu0 0.0
        %1042 = vmatpush1.xpose.msra.mxu0 0.0
        %1043 = vmatprep.subr.mxu0 0.0
        %1044 = vmatpush1.xpose.msra.mxu0 0.0
        %1045 = vmatprep.subr.mxu0 0.0
        %1046 = vmatpush1.xpose.msra.mxu0 0.0
        %1047 = vmatprep.subr.mxu0 0.0
        %1048 = vmatpush1.xpose.msra.mxu0 0.0
        %1049 = vmatprep.subr.mxu0 0.0
        %1050 = vmatpush1.xpose.msra.mxu0 0.0
        %1051 = vmatprep.subr.mxu0 0.0
        %1052 = vmatpush1.xpose.msra.mxu0 0.0
        %1053 = vmatprep.subr.mxu0 0.0
        %1054 = vmatpush1.xpose.msra.mxu0 0.0
        %1055 = vmatprep.subr.mxu0 0.0
        %1056 = vmatpush1.xpose.msra.mxu0 0.0
        %1057 = vmatprep.subr.mxu0 0.0
        %1058 = vmatpush1.xpose.msra.mxu0 0.0
        %1059 = vmatprep.subr.mxu0 0.0
        %1060 = vmatpush1.xpose.msra.mxu0 0.0
        %1061 = vmatprep.mubr.f32.mxu0 0.0
        %1062 = vmatmul.mubr.f32.gmra.mrb[0].mxu0 %v986
        %v1063 = vpop.f32.mrb[0].mxu0
        %v1064 = vadd.f32 %v982, %v1063
        %v1065 = vpop.f32.mrb[0].mxu0
        %1066 = vmatprep.mubr.f32.mxu0 0.0
        %1067 = vmatmul.mubr.f32.gmra.mrb[0].mxu0 %v989
        %v1068 = vpop.f32.mrb[0].mxu0
        %v1069 = vadd.f32 %v983, %v1068
        %v1070 = vpop.f32.mrb[0].mxu0
        %1071 = vdwg.mxu0
        %vm1072 = vcmask 130048
        %v1073 = vsel %vm1072, %v1064, -inf
        %1074 = vmax.xlane.f32.xlu0 %v1073
        %v1075 = vpop.xlane.xlu0 %1074
        %v1076 = vsel %vm1072, %v1069, -inf
        %1077 = vmax.xlane.f32.xlu0 %v1076
        %v1078 = vpop.xlane.xlu0 %1077
        %v1079 = vsub.f32 %v1064, %v1075
        %v1080 = vsub.f32 %v1069, %v1078
        %v1081 = vmul.f32 %v1079, 1.442695
        %v1082 = vpow.pop %v1081
        %v1083 = vmul.f32 %v1080, 1.442695
        %v1084 = vpow.pop %v1083
        %v1085 = vsel %vm1072, %v1082, 0.0
        %1086 = vadd.xlane.f32.xlu0 %v1085
        %v1087 = vpop.xlane.xlu0 %1086
        %v1088 = vsel %vm1072, %v1084, 0.0
        %1089 = vadd.xlane.f32.xlu0 %v1088
        %v1090 = vpop.xlane.xlu0 %1089
        %v1091 = vrcp.pop %v1087
        %v1092 = vmul.f32 %v1082, %v1091
        %v1093 = vrcp.pop %v1090
        %v1094 = vmul.f32 %v1084, %v1093
        %v1096 = vsel %vm1072, %v1092, 0
        %v1099 = vsel %vm1072, %v1094, 0
        %1101 = vmatprep.subr.mxu0 0.0
        %1102 = vmatpush1.msra.mxu0 %v974
        %1103 = vmatprep.subr.mxu0 0.0
        %1104 = vmatpush1.msra.mxu0 %v979
        %1105 = vmatprep.subr.mxu0 0.0
        %1106 = vmatpush1.msra.mxu0 0.0
        %1107 = vmatprep.subr.mxu0 0.0
        %1108 = vmatpush1.msra.mxu0 0.0
        %1109 = vmatprep.subr.mxu0 0.0
        %1110 = vmatpush1.msra.mxu0 0.0
        %1111 = vmatprep.subr.mxu0 0.0
        %1112 = vmatpush1.msra.mxu0 0.0
        %1113 = vmatprep.subr.mxu0 0.0
        %1114 = vmatpush1.msra.mxu0 0.0
        %1115 = vmatprep.subr.mxu0 0.0
        %1116 = vmatpush1.msra.mxu0 0.0
        %1117 = vmatprep.subr.mxu0 0.0
        %1118 = vmatpush1.msra.mxu0 0.0
        %1119 = vmatprep.subr.mxu0 0.0
        %1120 = vmatpush1.msra.mxu0 0.0
        %1121 = vmatprep.subr.mxu0 0.0
        %1122 = vmatpush1.msra.mxu0 0.0
        %1123 = vmatprep.subr.mxu0 0.0
        %1124 = vmatpush1.msra.mxu0 0.0
        %1125 = vmatprep.subr.mxu0 0.0
        %1126 = vmatpush1.msra.mxu0 0.0
        %1127 = vmatprep.subr.mxu0 0.0
        %1128 = vmatpush1.msra.mxu0 0.0
        %1129 = vmatprep.subr.mxu0 0.0
        %1130 = vmatpush1.msra.mxu0 0.0
        %1131 = vmatprep.subr.mxu0 0.0
        %1132 = vmatpush1.msra.mxu0 0.0
        %1133 = vmatprep.subr.mxu0 0.0
        %1134 = vmatpush1.msra.mxu0 0.0
        %1135 = vmatprep.subr.mxu0 0.0
        %1136 = vmatpush1.msra.mxu0 0.0
        %1137 = vmatprep.subr.mxu0 0.0
        %1138 = vmatpush1.msra.mxu0 0.0
        %1139 = vmatprep.subr.mxu0 0.0
        %1140 = vmatpush1.msra.mxu0 0.0
        %1141 = vmatprep.subr.mxu0 0.0
        %1142 = vmatpush1.msra.mxu0 0.0
        %1143 = vmatprep.subr.mxu0 0.0
        %1144 = vmatpush1.msra.mxu0 0.0
        %1145 = vmatprep.subr.mxu0 0.0
        %1146 = vmatpush1.msra.mxu0 0.0
        %1147 = vmatprep.subr.mxu0 0.0
        %1148 = vmatpush1.msra.mxu0 0.0
        %1149 = vmatprep.subr.mxu0 0.0
        %1150 = vmatpush1.msra.mxu0 0.0
        %1151 = vmatprep.subr.mxu0 0.0
        %1152 = vmatpush1.msra.mxu0 0.0
        %1153 = vmatprep.subr.mxu0 0.0
        %1154 = vmatpush1.msra.mxu0 0.0
        %1155 = vmatprep.subr.mxu0 0.0
        %1156 = vmatpush1.msra.mxu0 0.0
        %1157 = vmatprep.subr.mxu0 0.0
        %1158 = vmatpush1.msra.mxu0 0.0
        %1159 = vmatprep.subr.mxu0 0.0
        %1160 = vmatpush1.msra.mxu0 0.0
        %1161 = vmatprep.subr.mxu0 0.0
        %1162 = vmatpush1.msra.mxu0 0.0
        %1163 = vmatprep.subr.mxu0 0.0
        %1164 = vmatpush1.msra.mxu0 0.0
        %1165 = vmatprep.mubr.f32.mxu0 0.0
        %1166 = vmatmul.mubr.f32.gmra.mrb[0].mxu0 %v1096
        %v1167 = vpop.f32.mrb[0].mxu0
        %v1168 = vadd.f32 0.0, %v1167
        %v1169 = vpop.f32.mrb[0].mxu0
        %1170 = vmatprep.mubr.f32.mxu0 0.0
        %1171 = vmatmul.mubr.f32.gmra.mrb[0].mxu0 %v1099
        %v1172 = vpop.f32.mrb[0].mxu0
        %v1173 = vadd.f32 0.0, %v1172
        %v1174 = vpop.f32.mrb[0].mxu0
        %1175 = vdwg.mxu0
        %v1176 = vld [vmem:[#allocation2] sm:$0xff]
        %v1177 = vld [vmem:[#allocation2 + $0x8] sm:$0xff]
        %v1178 = vld [vmem:[%s627] sm:$0xff]
        %v1180 = vsel %vm984, %v1168, 0
        %v1183 = vsel %vm984, %v1173, 0
        %1185 = vmatprep.subr.mxu0 0.0
        %1186 = vmatpush1.msra.mxu0 %v1178
        %1187 = vmatprep.subr.mxu0 0.0
        %1188 = vmatpush1.msra.mxu0 0.0
        %1189 = vmatprep.subr.mxu0 0.0
        %1190 = vmatpush1.msra.mxu0 0.0
        %1191 = vmatprep.subr.mxu0 0.0
        %1192 = vmatpush1.msra.mxu0 0.0
        %1193 = vmatprep.subr.mxu0 0.0
        %1194 = vmatpush1.msra.mxu0 0.0
        %1195 = vmatprep.subr.mxu0 0.0
        %1196 = vmatpush1.msra.mxu0 0.0
        %1197 = vmatprep.subr.mxu0 0.0
        %1198 = vmatpush1.msra.mxu0 0.0
        %1199 = vmatprep.subr.mxu0 0.0
        %1200 = vmatpush1.msra.mxu0 0.0
        %1201 = vmatprep.subr.mxu0 0.0
        %1202 = vmatpush1.msra.mxu0 0.0
        %1203 = vmatprep.subr.mxu0 0.0
        %1204 = vmatpush1.msra.mxu0 0.0
        %1205 = vmatprep.subr.mxu0 0.0
        %1206 = vmatpush1.msra.mxu0 0.0
        %1207 = vmatprep.subr.mxu0 0.0
        %1208 = vmatpush1.msra.mxu0 0.0
        %1209 = vmatprep.subr.mxu0 0.0
        %1210 = vmatpush1.msra.mxu0 0.0
        %1211 = vmatprep.subr.mxu0 0.0
        %1212 = vmatpush1.msra.mxu0 0.0
        %1213 = vmatprep.subr.mxu0 0.0
        %1214 = vmatpush1.msra.mxu0 0.0
        %1215 = vmatprep.subr.mxu0 0.0
        %1216 = vmatpush1.msra.mxu0 0.0
        %1217 = vmatprep.subr.mxu0 0.0
        %1218 = vmatpush1.msra.mxu0 0.0
        %1219 = vmatprep.subr.mxu0 0.0
        %1220 = vmatpush1.msra.mxu0 0.0
        %1221 = vmatprep.subr.mxu0 0.0
        %1222 = vmatpush1.msra.mxu0 0.0
        %1223 = vmatprep.subr.mxu0 0.0
        %1224 = vmatpush1.msra.mxu0 0.0
        %1225 = vmatprep.subr.mxu0 0.0
        %1226 = vmatpush1.msra.mxu0 0.0
        %1227 = vmatprep.subr.mxu0 0.0
        %1228 = vmatpush1.msra.mxu0 0.0
        %1229 = vmatprep.subr.mxu0 0.0
        %1230 = vmatpush1.msra.mxu0 0.0
        %1231 = vmatprep.subr.mxu0 0.0
        %1232 = vmatpush1.msra.mxu0 0.0
        %1233 = vmatprep.subr.mxu0 0.0
        %1234 = vmatpush1.msra.mxu0 0.0
        %1235 = vmatprep.subr.mxu0 0.0
        %1236 = vmatpush1.msra.mxu0 0.0
        %1237 = vmatprep.subr.mxu0 0.0
        %1238 = vmatpush1.msra.mxu0 0.0
        %1239 = vmatprep.subr.mxu0 0.0
        %1240 = vmatpush1.msra.mxu0 0.0
        %1241 = vmatprep.subr.mxu0 0.0
        %1242 = vmatpush1.msra.mxu0 0.0
        %1243 = vmatprep.subr.mxu0 0.0
        %1244 = vmatpush1.msra.mxu0 0.0
        %1245 = vmatprep.subr.mxu0 0.0
        %1246 = vmatpush1.msra.mxu0 0.0
        %1247 = vmatprep.subr.mxu0 0.0
        %1248 = vmatpush1.msra.mxu0 0.0
        %1249 = vmatprep.mubr.f32.mxu0 0.0
        %1250 = vmatmul.mubr.f32.gmra.mrb[0].mxu0 %v1180
        %v1251 = vpop.f32.mrb[0].mxu0
        %v1252 = vadd.f32 0.0, %v1251
        %v1253 = vpop.f32.mrb[0].mxu0
        %1254 = vmatprep.mubr.f32.mxu0 0.0
        %1255 = vmatmul.mubr.f32.gmra.mrb[0].mxu0 %v1183
        %v1256 = vpop.f32.mrb[0].mxu0
        %v1257 = vadd.f32 0.0, %v1256
        %v1258 = vpop.f32.mrb[0].mxu0
        %1259 = vdwg.mxu0
        %v1260 = vadd.f32 %v1176, %v1252
        %v1261 = vadd.f32 %v1177, %v1257
        %1262 = vst.msk [vmem:[#allocation2] sm:$0xff] %vm670, %v1260
        %1263 = vst.msk [vmem:[#allocation2 + $0x8] sm:$0xff] %vm670, %v1261
        %p1264 = scmp.eq.s32.totalorder %s31, 3
        // Predicated region
        $region73: #{tpu_custom_call.1} parent=67 // pred_check
          %p1265 = pneg %p1264
        $region74: #{tpu_custom_call.1} parent=67 // pred_check_branch
          %1267 = sbr.rel (%p1265) target = $region76
        $region75: #{tpu_custom_call.1} parent=67 // pred_region
          %v1268 = vld [vmem:[#allocation2] sm:$0xff]
          %v1269 = vld [vmem:[#allocation2 + $0x8] sm:$0xff]
          %v1270 = vld [vmem:[%s10] sm:$0x1]
          %v1272 = vlaneseq
          %v1273 = vshrl.u32 %v1272, 7
          %v1274 = vsub.s32 0, %v1273
          %v1275 = vrot.slane %v1270, %v1274
          %v1277 = vadd.f32 %v1268, %v1275
          %v1278 = vadd.f32 %v1269, %v1275
          %1279 = vst.msk [vmem:[%s594] sm:$0xff] %vm670, %v1277
          %1280 = vst.msk [vmem:[%s594 + $0x8] sm:$0xff] %vm670, %v1278
        $region76: #{tpu_custom_call.1} parent=67 // pred_fallthru
          _
        %s1281 = sand.u32 %s369, 1
        %s1282 = scalar_lea.sflag [#allocation4], %s1281
        %s1283 = sand.u32 %s369, 1
        %s1284 = smul.addr %s1283, 16
        %s1285 = scalar_lea.vmem [#allocation3], %s1284
        // Predicated region
        $region77: #{tpu_custom_call.1} parent=67 // pred_check
          %p1286 = pneg %p379
        $region78: #{tpu_custom_call.1} parent=67 // pred_check_branch
          %1288 = sbr.rel (%p1286) target = $region80
        $region79: #{tpu_custom_call.1} parent=67 // pred_region
          %s1290 = ssub.s32 256, 256
          %1291 = vsyncadd %s1282, %s1290
          %s1292 = smul.addr %s30, 2
          %s1293 = smul.addr %s1292, 128
          %s1294 = scalar_lea.hbm %s12, %s1293
          %s1295 = sshll.u32 %s1285, 4
          %s1296 = int_to_ptr.vmem [resolvable:$true] %s1295
          %1301 = dma.vmem_to_hbm [thread:$0]  %s1296, 256, %s1294, %s1282, 128, 128, 8
        $region80: #{tpu_custom_call.1} parent=67 // pred_fallthru
          _
      $region68: #{tpu_custom_call.1} parent=5 // pred_fallthru
        _
      %p1302 = scmp.le.s32.totalorder 2, %s21
      // Predicated region
      $region81: #{tpu_custom_call.1} parent=5 // pred_check
        %p1303 = pneg %p1302
      $region82: #{tpu_custom_call.1} parent=5 // pred_check_branch
        %1305 = sbr.rel (%p1303) target = $region84
      $region83: #{tpu_custom_call.1} parent=5 // pred_region
        %s1306 = ssub.s32 %s21, 2
        // Predicated region
        $region85: #{tpu_custom_call.1} parent=83 // pred_check
          %p1307 = pneg %p385
        $region86: #{tpu_custom_call.1} parent=83 // pred_check_branch
          %1309 = sbr.rel (%p1307) target = $region88
        $region87: #{tpu_custom_call.1} parent=83 // pred_region
          %s1310 = sand.u32 %s370, 1
          %s1311 = scalar_lea.sflag [#allocation4], %s1310
          %s1312 = sand.u32 %s370, 1
          %s1313 = smul.addr %s1312, 16
          %s1314 = scalar_lea.vmem [#allocation3], %s1313
          %1315 = dma.done %s1311, 256
        $region88: #{tpu_custom_call.1} parent=83 // pred_fallthru
          _
      $region84: #{tpu_custom_call.1} parent=5 // pred_fallthru
        _
    $region6: #{tpu_custom_call.1} parent=1 // loop_footer
      %s25 = sadd.s32 1, %s21
    $region7: #{tpu_custom_call.1} parent=1 // loop_footer_branch
      %20 = sbr.rel target = $region3
    $region8: #{tpu_custom_call.1} parent=1 // loop_exit
      _
    %1316 = vsyncpa [#allocation4], 1
    %s1317 = scalar_lea.sflag [#allocation4], 1
    %1318 = vsyncpa %s1317, 1

</llo_original>
